<compile_context>
chip_gen: v5e
topology: v5e:2x2
jax: 0.10.0
libtpu: 0.0.40
codegen_flags: <defaults>
</compile_context>

<pallas_src>
import jax
import jax.numpy as jnp
from jax.experimental import pallas as pl
from jax.experimental.pallas import tpu as pltpu

# ---------------- sizes ----------------
B = 16                  # batch (single block: whole batch in one kernel invocation)
C, HH, WW = 4, 16, 16
D = C * HH * WW         # 1024 flattened input features
HID = 256               # hidden width
LAT = 128               # latent width (lane friendly)


def vae_kernel(x_ref, eps_ref,
               w1_ref, b1_ref, wh_ref, bh_ref,
               w2_ref, b2_ref, w3_ref, b3_ref,
               recon_ref, mu_ref, logvar_ref):
    # ---- encoder ----
    x = x_ref[...]                                                            # bf16 [B, D]
    h = jnp.dot(x, w1_ref[...], preferred_element_type=jnp.float32) + b1_ref[...]
    h = jnp.maximum(h, 0.0)                                                   # ReLU (f32)

    heads = jnp.dot(h.astype(jnp.bfloat16), wh_ref[...],
                    preferred_element_type=jnp.float32) + bh_ref[...]         # [B, 2*LAT]
    mu = heads[:, :LAT]
    logvar = heads[:, LAT:]

    # ---- reparameterize: z = mu + eps * exp(0.5 * logvar) ----
    z = mu + eps_ref[...] * jnp.exp(0.5 * logvar)

    # ---- decoder ----
    h2 = jnp.dot(z.astype(jnp.bfloat16), w2_ref[...],
                 preferred_element_type=jnp.float32) + b2_ref[...]
    h2 = jnp.maximum(h2, 0.0)                                                 # ReLU (f32)
    logits = jnp.dot(h2.astype(jnp.bfloat16), w3_ref[...],
                     preferred_element_type=jnp.float32) + b3_ref[...]

    recon_ref[...] = jax.nn.sigmoid(logits).astype(recon_ref.dtype)           # bf16
    mu_ref[...] = mu
    logvar_ref[...] = logvar


def vae_forward(x_nchw, params, eps):
    """x_nchw: [B, C, H, W] float32; eps: [B, LAT] float32 ~ N(0,1).
    Returns (recon NCHW bf16, mu f32, logvar f32)."""
    b = x_nchw.shape[0]
    x_flat = x_nchw.reshape(b, -1).astype(jnp.bfloat16)                       # [B, D] bf16

    # Advisory cost estimate (scheduling hint for XLA around the custom call).
    flops = 2 * b * (D * HID + HID * 2 * LAT + LAT * HID + HID * D)
    weight_bytes = 2 * (D * HID + HID * 2 * LAT + LAT * HID + HID * D) \
                 + 4 * (HID + 2 * LAT + HID + D)
    io_bytes = 2 * b * D + 4 * b * LAT + 2 * b * D + 4 * b * 2 * LAT
    cost = pl.CostEstimate(flops=flops,
                           transcendentals=b * (LAT + D),
                           bytes_accessed=weight_bytes + io_bytes)

    # Single invocation, no grid: every operand is a whole-array VMEM block.
    recon_flat, mu, logvar = pl.pallas_call(
        vae_kernel,
        out_shape=(
            jax.ShapeDtypeStruct((b, D), jnp.bfloat16),
            jax.ShapeDtypeStruct((b, LAT), jnp.float32),
            jax.ShapeDtypeStruct((b, LAT), jnp.float32),
        ),
        cost_estimate=cost,
    )(
        x_flat, eps,
        params["w1"], params["b1"],
        params["wh"], params["bh"],
        params["w2"], params["b2"],
        params["w3"], params["b3"],
    )
    return recon_flat.reshape(x_nchw.shape), mu, logvar


def init_params(key):
    """Deterministic synthetic weights. Linear stored as [in, out] + bias [1, out].
    Weights cast to bf16 (halves weight DMA); biases kept f32 (tiny, added post-matmul)."""
    ks = jax.random.split(key, 10)

    def lin(kw, kb, fan_in, fan_out):
        lim = 1.0 / jnp.sqrt(float(fan_in))
        w = jax.random.uniform(kw, (fan_in, fan_out), jnp.float32, -lim, lim)
        b = jax.random.uniform(kb, (1, fan_out), jnp.float32, -lim, lim)
        return w, b

    w1, b1 = lin(ks[0], ks[1], D, HID)
    wmu, bmu = lin(ks[2], ks[3], HID, LAT)
    wlv, blv = lin(ks[4], ks[5], HID, LAT)
    w2, b2 = lin(ks[6], ks[7], LAT, HID)
    w3, b3 = lin(ks[8], ks[9], HID, D)

    # Fuse the mu/logvar heads into a single [HID, 2*LAT] matmul.
    wh = jnp.concatenate([wmu, wlv], axis=1)
    bh = jnp.concatenate([bmu, blv], axis=1)

    bf16 = lambda a: a.astype(jnp.bfloat16)
    return dict(w1=bf16(w1), b1=b1, wh=bf16(wh), bh=bh,
                w2=bf16(w2), b2=b2, w3=bf16(w3), b3=b3)


if __name__ == "__main__":
    key = jax.random.PRNGKey(0)
    k_param, k_x, k_eps = jax.random.split(key, 3)

    params = init_params(k_param)
    x = jax.random.normal(k_x, (B, C, HH, WW), jnp.float32)
    eps = jax.random.normal(k_eps, (B, LAT), jnp.float32)       # torch.randn_like(std)

    recon, mu, logvar = jax.jit(vae_forward)(x, params, eps)
    jax.block_until_ready((recon, mu, logvar))

    assert recon.shape == x.shape
    assert mu.shape == (B, LAT) and logvar.shape == (B, LAT)
    assert bool(jnp.all(jnp.isfinite(recon.astype(jnp.float32))))
    assert bool(jnp.all((recon >= 0.0) & (recon <= 1.0)))       # sigmoid output range
    assert bool(jnp.all(jnp.isfinite(mu))) and bool(jnp.all(jnp.isfinite(logvar)))
    print("KERNEL_OK")
</pallas_src>

<mosaic_0001>
module attributes {stable_mosaic.version = 11 : i64} {
  func.func @vae_kernel(%arg0: memref<16x1024xbf16, #tpu.memory_space<vmem>>, %arg1: memref<16x128xf32, #tpu.memory_space<vmem>>, %arg2: memref<1024x256xbf16, #tpu.memory_space<vmem>>, %arg3: memref<1x256xf32, #tpu.memory_space<vmem>>, %arg4: memref<256x256xbf16, #tpu.memory_space<vmem>>, %arg5: memref<1x256xf32, #tpu.memory_space<vmem>>, %arg6: memref<128x256xbf16, #tpu.memory_space<vmem>>, %arg7: memref<1x256xf32, #tpu.memory_space<vmem>>, %arg8: memref<256x1024xbf16, #tpu.memory_space<vmem>>, %arg9: memref<1x1024xf32, #tpu.memory_space<vmem>>, %arg10: memref<16x1024xbf16, #tpu.memory_space<vmem>>, %arg11: memref<16x128xf32, #tpu.memory_space<vmem>>, %arg12: memref<16x128xf32, #tpu.memory_space<vmem>>) attributes {dimension_semantics = [], scalar_prefetch = 0 : i64, scratch_operands = 0 : i64, tpu.core_type = #tpu.core_type<tc>} {
    %c0 = arith.constant 0 : index
    %c0_0 = arith.constant 0 : index
    %0 = vector.load %arg0[%c0, %c0_0] : memref<16x1024xbf16, #tpu.memory_space<vmem>>, vector<16x1024xbf16>
    %c0_1 = arith.constant 0 : index
    %c0_2 = arith.constant 0 : index
    %1 = vector.load %arg2[%c0_1, %c0_2] : memref<1024x256xbf16, #tpu.memory_space<vmem>>, vector<1024x256xbf16>
    %cst = arith.constant dense<0.000000e+00> : vector<16x256xf32>
    %2 = tpu.matmul %0, %1, %cst {dimension_numbers = #tpu.dot_dimension_numbers<[1], [0], [0], [1], [0, 0, 1, 1], [], []>} : vector<16x1024xbf16>, vector<1024x256xbf16>, vector<16x256xf32> -> vector<16x256xf32>
    %c0_3 = arith.constant 0 : index
    %c0_4 = arith.constant 0 : index
    %3 = vector.load %arg3[%c0_3, %c0_4] : memref<1x256xf32, #tpu.memory_space<vmem>>, vector<1x256xf32>
    %4 = vector.broadcast %3 : vector<1x256xf32> to vector<16x256xf32>
    %5 = arith.addf %2, %4 : vector<16x256xf32>
    %cst_5 = arith.constant 0.000000e+00 : f32
    %6 = vector.broadcast %cst_5 : f32 to vector<16x256xf32>
    %7 = arith.maximumf %5, %6 : vector<16x256xf32>
    %8 = arith.truncf %7 : vector<16x256xf32> to vector<16x256xbf16>
    %c0_6 = arith.constant 0 : index
    %c0_7 = arith.constant 0 : index
    %9 = vector.load %arg4[%c0_6, %c0_7] : memref<256x256xbf16, #tpu.memory_space<vmem>>, vector<256x256xbf16>
    %cst_8 = arith.constant dense<0.000000e+00> : vector<16x256xf32>
    %10 = tpu.matmul %8, %9, %cst_8 {dimension_numbers = #tpu.dot_dimension_numbers<[1], [0], [0], [1], [0, 0, 1, 1], [], []>} : vector<16x256xbf16>, vector<256x256xbf16>, vector<16x256xf32> -> vector<16x256xf32>
    %c0_9 = arith.constant 0 : index
    %c0_10 = arith.constant 0 : index
    %11 = vector.load %arg5[%c0_9, %c0_10] : memref<1x256xf32, #tpu.memory_space<vmem>>, vector<1x256xf32>
    %12 = vector.broadcast %11 : vector<1x256xf32> to vector<16x256xf32>
    %13 = arith.addf %10, %12 : vector<16x256xf32>
    %14 = vector.extract_strided_slice %13 {offsets = [0, 0], sizes = [16, 128], strides = [1, 1]} : vector<16x256xf32> to vector<16x128xf32>
    %15 = vector.extract_strided_slice %13 {offsets = [0, 128], sizes = [16, 128], strides = [1, 1]} : vector<16x256xf32> to vector<16x128xf32>
    %c0_11 = arith.constant 0 : index
    %c0_12 = arith.constant 0 : index
    %16 = vector.load %arg1[%c0_11, %c0_12] : memref<16x128xf32, #tpu.memory_space<vmem>>, vector<16x128xf32>
    %cst_13 = arith.constant 5.000000e-01 : f32
    %17 = vector.broadcast %cst_13 : f32 to vector<16x128xf32>
    %18 = arith.mulf %17, %15 : vector<16x128xf32>
    %19 = math.exp %18 : vector<16x128xf32>
    %20 = arith.mulf %16, %19 : vector<16x128xf32>
    %21 = arith.addf %14, %20 : vector<16x128xf32>
    %22 = arith.truncf %21 : vector<16x128xf32> to vector<16x128xbf16>
    %c0_14 = arith.constant 0 : index
    %c0_15 = arith.constant 0 : index
    %23 = vector.load %arg6[%c0_14, %c0_15] : memref<128x256xbf16, #tpu.memory_space<vmem>>, vector<128x256xbf16>
    %cst_16 = arith.constant dense<0.000000e+00> : vector<16x256xf32>
    %24 = tpu.matmul %22, %23, %cst_16 {dimension_numbers = #tpu.dot_dimension_numbers<[1], [0], [0], [1], [0, 0, 1, 1], [], []>} : vector<16x128xbf16>, vector<128x256xbf16>, vector<16x256xf32> -> vector<16x256xf32>
    %c0_17 = arith.constant 0 : index
    %c0_18 = arith.constant 0 : index
    %25 = vector.load %arg7[%c0_17, %c0_18] : memref<1x256xf32, #tpu.memory_space<vmem>>, vector<1x256xf32>
    %26 = vector.broadcast %25 : vector<1x256xf32> to vector<16x256xf32>
    %27 = arith.addf %24, %26 : vector<16x256xf32>
    %cst_19 = arith.constant 0.000000e+00 : f32
    %28 = vector.broadcast %cst_19 : f32 to vector<16x256xf32>
    %29 = arith.maximumf %27, %28 : vector<16x256xf32>
    %30 = arith.truncf %29 : vector<16x256xf32> to vector<16x256xbf16>
    %c0_20 = arith.constant 0 : index
    %c0_21 = arith.constant 0 : index
    %31 = vector.load %arg8[%c0_20, %c0_21] : memref<256x1024xbf16, #tpu.memory_space<vmem>>, vector<256x1024xbf16>
    %cst_22 = arith.constant dense<0.000000e+00> : vector<16x1024xf32>
    %32 = tpu.matmul %30, %31, %cst_22 {dimension_numbers = #tpu.dot_dimension_numbers<[1], [0], [0], [1], [0, 0, 1, 1], [], []>} : vector<16x256xbf16>, vector<256x1024xbf16>, vector<16x1024xf32> -> vector<16x1024xf32>
    %c0_23 = arith.constant 0 : index
    %c0_24 = arith.constant 0 : index
    %33 = vector.load %arg9[%c0_23, %c0_24] : memref<1x1024xf32, #tpu.memory_space<vmem>>, vector<1x1024xf32>
    %34 = vector.broadcast %33 : vector<1x1024xf32> to vector<16x1024xf32>
    %35 = arith.addf %32, %34 : vector<16x1024xf32>
    %36 = arith.negf %35 : vector<16x1024xf32>
    %37 = math.exp %36 : vector<16x1024xf32>
    %cst_25 = arith.constant 1.000000e+00 : f32
    %38 = vector.broadcast %cst_25 : f32 to vector<16x1024xf32>
    %39 = arith.addf %38, %37 : vector<16x1024xf32>
    %40 = arith.divf %38, %39 : vector<16x1024xf32>
    %41 = arith.truncf %40 : vector<16x1024xf32> to vector<16x1024xbf16>
    %c0_26 = arith.constant 0 : index
    %c0_27 = arith.constant 0 : index
    %42 = vector.load %arg10[%c0_26, %c0_27] : memref<16x1024xbf16, #tpu.memory_space<vmem>>, vector<16x1024xbf16>
    tpu.vector_store %arg10[%c0_26, %c0_27], %41 {strides = array<i32>} : memref<16x1024xbf16, #tpu.memory_space<vmem>>, vector<16x1024xbf16>,
    %c0_28 = arith.constant 0 : index
    %c0_29 = arith.constant 0 : index
    %43 = vector.load %arg11[%c0_28, %c0_29] : memref<16x128xf32, #tpu.memory_space<vmem>>, vector<16x128xf32>
    tpu.vector_store %arg11[%c0_28, %c0_29], %14 {strides = array<i32>} : memref<16x128xf32, #tpu.memory_space<vmem>>, vector<16x128xf32>,
    %c0_30 = arith.constant 0 : index
    %c0_31 = arith.constant 0 : index
    %44 = vector.load %arg12[%c0_30, %c0_31] : memref<16x128xf32, #tpu.memory_space<vmem>>, vector<16x128xf32>
    tpu.vector_store %arg12[%c0_30, %c0_31], %15 {strides = array<i32>} : memref<16x128xf32, #tpu.memory_space<vmem>>, vector<16x128xf32>,
    return
  }
}

</mosaic_0001>

<llo_original>
// kernel: vae_forward.1
$region0: #{vae_forward.1}
  #allocation0 [shape = 'u32[]', space=smem, size = 0x4, offset = 0x4, fixed_abs, tag = 'smem constant byte address 0x4 - core index']
  #allocation1 [shape = 'u32[72,128]{1,0:T(1,128)}', space=vmem, size = 0x9000, scoped, tag = 'internal scratch']
  %s0 = inlined_call_operand.vmem [shape: bf16[16,1024], index: 0, kind: input, shape index: {}]
  %s1 = inlined_call_operand.vmem [shape: f32[16,128], index: 1, kind: input, shape index: {}]
  %s2 = inlined_call_operand.vmem [shape: bf16[1024,256], index: 2, kind: input, shape index: {}]
  %s3 = inlined_call_operand.vmem [shape: f32[1,256], index: 3, kind: input, shape index: {}]
  %s4 = inlined_call_operand.hbm [shape: bf16[256,256], index: 4, kind: input, shape index: {}]
  %s5 = inlined_call_operand.vmem [shape: f32[1,256], index: 5, kind: input, shape index: {}]
  %s6 = inlined_call_operand.hbm [shape: bf16[128,256], index: 6, kind: input, shape index: {}]
  %s7 = inlined_call_operand.vmem [shape: f32[1,256], index: 7, kind: input, shape index: {}]
  %s8 = inlined_call_operand.vmem [shape: bf16[256,1024], index: 8, kind: input, shape index: {}]
  %s9 = inlined_call_operand.vmem [shape: f32[1,1024], index: 9, kind: input, shape index: {}]
  %s10 = inlined_call_operand.vmem [shape: bf16[16,1024], index: 10, kind: output, shape index: {0}]
  %s11 = inlined_call_operand.hbm [shape: f32[16,128], index: 11, kind: output, shape index: {1}]
  %s12 = inlined_call_operand.hbm [shape: f32[16,128], index: 12, kind: output, shape index: {2}]
  %13 = xla_tuple %s10, %s11, %s12
  %s14 = sld [smem:[#allocation0]]
  $region74: #{vae_forward.1} parent=0
    _
  %s16 = ssub.s32 1, %s14
  %s17 = scalar_select 0, %s16, %s14
  $region1: #{vae_forward.1} parent=0
    #allocation2 [shape = 'u8[131072]{0}', space=vmem, size = 0x20000, scoped, tag = 'input window, operand 4, single buffered']
    #allocation3 [shape = 's32[1]{0}', space=sflag, size = 0x4, scoped, tag = 'scoped memory for vae_forward.1']
    #allocation4 [shape = 's32[1]{0}', space=sflag, size = 0x4, scoped, tag = 'scoped memory for vae_forward.1']
    #allocation5 [shape = 'u8[65536]{0}', space=vmem, size = 0x10000, scoped, tag = 'input window, operand 6, single buffered']
    #allocation6 [shape = 's32[1]{0}', space=sflag, size = 0x4, scoped, tag = 'scoped memory for vae_forward.1']
    #allocation7 [shape = 'u8[8192]{0}', space=vmem, size = 0x2000, scoped, tag = 'output window, operand 1, single buffered']
    #allocation8 [shape = 'u8[8192]{0}', space=vmem, size = 0x2000, scoped, tag = 'output window, operand 2, single buffered']
    #allocation9 [shape = 's32[1]{0}', space=sflag, size = 0x4, scoped, tag = 'scoped memory for vae_forward.1']
    %18 = vsyncpa [#allocation3], 0
    %19 = vsyncpa [#allocation6], 0
    %20 = vsyncpa [#allocation4], 0
    %21 = vsyncpa [#allocation9], 0
    // Predicated region
    $region2: #{vae_forward.1} parent=1 // pred_check
      _
    $region3: #{vae_forward.1} parent=1 // pred_check_branch
      %23 = sbr.rel (0) target = $region5
    $region4: #{vae_forward.1} parent=1 // pred_region
      _
    $region5: #{vae_forward.1} parent=1 // pred_fallthru
      _
    // Predicated region
    $region6: #{vae_forward.1} parent=1 // pred_check
      _
    $region7: #{vae_forward.1} parent=1 // pred_check_branch
      %25 = sbr.rel (0) target = $region9
    $region8: #{vae_forward.1} parent=1 // pred_region
      _
    $region9: #{vae_forward.1} parent=1 // pred_fallthru
      _
    // Predicated region
    $region10: #{vae_forward.1} parent=1 // pred_check
      _
    $region11: #{vae_forward.1} parent=1 // pred_check_branch
      %27 = sbr.rel (0) target = $region13
    $region12: #{vae_forward.1} parent=1 // pred_region
      _
    $region13: #{vae_forward.1} parent=1 // pred_fallthru
      _
    // Predicated region
    $region14: #{vae_forward.1} parent=1 // pred_check
      _
    $region15: #{vae_forward.1} parent=1 // pred_check_branch
      %29 = sbr.rel (0) target = $region17
    $region16: #{vae_forward.1} parent=1 // pred_region
      _
    $region17: #{vae_forward.1} parent=1 // pred_fallthru
      _
    // Predicated region
    $region18: #{vae_forward.1} parent=1 // pred_check
      _
    $region19: #{vae_forward.1} parent=1 // pred_check_branch
      %31 = sbr.rel (0) target = $region21
    $region20: #{vae_forward.1} parent=1 // pred_region
      %33 = vsyncadd [#allocation3], 0
      %s34 = sshll.u32 %s4, 4
      %s35 = int_to_ptr.hbm [resolvable:$true] %s34
      %s36 = sshll.u32 [#allocation2], 4
      %s37 = int_to_ptr.vmem [resolvable:$true] %s36
      %42 = dma.hbm_to_vmem [thread:$0]  %s35, 4096, %s37, [#allocation3], 128, 128, 8
    $region21: #{vae_forward.1} parent=1 // pred_fallthru
      _
    // Predicated region
    $region22: #{vae_forward.1} parent=1 // pred_check
      _
    $region23: #{vae_forward.1} parent=1 // pred_check_branch
      %44 = sbr.rel (0) target = $region25
    $region24: #{vae_forward.1} parent=1 // pred_region
      _
    $region25: #{vae_forward.1} parent=1 // pred_fallthru
      _
    // Predicated region
    $region26: #{vae_forward.1} parent=1 // pred_check
      _
    $region27: #{vae_forward.1} parent=1 // pred_check_branch
      %46 = sbr.rel (0) target = $region29
    $region28: #{vae_forward.1} parent=1 // pred_region
      %48 = vsyncadd [#allocation6], 0
      %s49 = sshll.u32 %s6, 4
      %s50 = int_to_ptr.hbm [resolvable:$true] %s49
      %s51 = sshll.u32 [#allocation5], 4
      %s52 = int_to_ptr.vmem [resolvable:$true] %s51
      %57 = dma.hbm_to_vmem [thread:$0]  %s50, 2048, %s52, [#allocation6], 128, 128, 8
    $region29: #{vae_forward.1} parent=1 // pred_fallthru
      _
    // Predicated region
    $region30: #{vae_forward.1} parent=1 // pred_check
      _
    $region31: #{vae_forward.1} parent=1 // pred_check_branch
      %59 = sbr.rel (0) target = $region33
    $region32: #{vae_forward.1} parent=1 // pred_region
      _
    $region33: #{vae_forward.1} parent=1 // pred_fallthru
      _
    // Predicated region
    $region34: #{vae_forward.1} parent=1 // pred_check
      _
    $region35: #{vae_forward.1} parent=1 // pred_check_branch
      %61 = sbr.rel (0) target = $region37
    $region36: #{vae_forward.1} parent=1 // pred_region
      _
    $region37: #{vae_forward.1} parent=1 // pred_fallthru
      _
    // Predicated region
    $region38: #{vae_forward.1} parent=1 // pred_check
      _
    $region39: #{vae_forward.1} parent=1 // pred_check_branch
      %63 = sbr.rel (0) target = $region41
    $region40: #{vae_forward.1} parent=1 // pred_region
      _
    $region41: #{vae_forward.1} parent=1 // pred_fallthru
      _
    // Predicated region
    $region42: #{vae_forward.1} parent=1 // pred_check
      _
    $region43: #{vae_forward.1} parent=1 // pred_check_branch
      %65 = sbr.rel (0) target = $region45
    $region44: #{vae_forward.1} parent=1 // pred_region
      %67 = dma.done [#allocation3], 4096
    $region45: #{vae_forward.1} parent=1 // pred_fallthru
      _
    // Predicated region
    $region46: #{vae_forward.1} parent=1 // pred_check
      _
    $region47: #{vae_forward.1} parent=1 // pred_check_branch
      %69 = sbr.rel (0) target = $region49
    $region48: #{vae_forward.1} parent=1 // pred_region
      %71 = dma.done [#allocation6], 2048
    $region49: #{vae_forward.1} parent=1 // pred_fallthru
      _
    %v72 = vld [vmem:[%s0] sm:$0xff]
    %v73 = vld [vmem:[%s0 + $0x8] sm:$0xff]
    %v74 = vld [vmem:[%s0 + $0x10] sm:$0xff]
    %v75 = vld [vmem:[%s0 + $0x18] sm:$0xff]
    %v76 = vld [vmem:[%s0 + $0x20] sm:$0xff]
    %v77 = vld [vmem:[%s0 + $0x28] sm:$0xff]
    %v78 = vld [vmem:[%s0 + $0x30] sm:$0xff]
    %v79 = vld [vmem:[%s0 + $0x38] sm:$0xff]
    %v80 = vld [vmem:[%s2] sm:$0xff]
    %v81 = vld [vmem:[%s2 + $0x8] sm:$0xff]
    %v82 = vld [vmem:[%s2 + $0x10] sm:$0xff]
    %v83 = vld [vmem:[%s2 + $0x18] sm:$0xff]
    %v84 = vld [vmem:[%s2 + $0x20] sm:$0xff]
    %v85 = vld [vmem:[%s2 + $0x28] sm:$0xff]
    %v86 = vld [vmem:[%s2 + $0x30] sm:$0xff]
    %v87 = vld [vmem:[%s2 + $0x38] sm:$0xff]
    %v88 = vld [vmem:[%s2 + $0x40] sm:$0xff]
    %v89 = vld [vmem:[%s2 + $0x48] sm:$0xff]
    %v90 = vld [vmem:[%s2 + $0x50] sm:$0xff]
    %v91 = vld [vmem:[%s2 + $0x58] sm:$0xff]
    %v92 = vld [vmem:[%s2 + $0x60] sm:$0xff]
    %v93 = vld [vmem:[%s2 + $0x68] sm:$0xff]
    %v94 = vld [vmem:[%s2 + $0x70] sm:$0xff]
    %v95 = vld [vmem:[%s2 + $0x78] sm:$0xff]
    %v96 = vld [vmem:[%s2 + $0x80] sm:$0xff]
    %v97 = vld [vmem:[%s2 + $0x88] sm:$0xff]
    %v98 = vld [vmem:[%s2 + $0x90] sm:$0xff]
    %v99 = vld [vmem:[%s2 + $0x98] sm:$0xff]
    %v100 = vld [vmem:[%s2 + $0xa0] sm:$0xff]
    %v101 = vld [vmem:[%s2 + $0xa8] sm:$0xff]
    %v102 = vld [vmem:[%s2 + $0xb0] sm:$0xff]
    %v103 = vld [vmem:[%s2 + $0xb8] sm:$0xff]
    %v104 = vld [vmem:[%s2 + $0xc0] sm:$0xff]
    %v105 = vld [vmem:[%s2 + $0xc8] sm:$0xff]
    %v106 = vld [vmem:[%s2 + $0xd0] sm:$0xff]
    %v107 = vld [vmem:[%s2 + $0xd8] sm:$0xff]
    %v108 = vld [vmem:[%s2 + $0xe0] sm:$0xff]
    %v109 = vld [vmem:[%s2 + $0xe8] sm:$0xff]
    %v110 = vld [vmem:[%s2 + $0xf0] sm:$0xff]
    %v111 = vld [vmem:[%s2 + $0xf8] sm:$0xff]
    %v112 = vld [vmem:[%s2 + $0x100] sm:$0xff]
    %v113 = vld [vmem:[%s2 + $0x108] sm:$0xff]
    %v114 = vld [vmem:[%s2 + $0x110] sm:$0xff]
    %v115 = vld [vmem:[%s2 + $0x118] sm:$0xff]
    %v116 = vld [vmem:[%s2 + $0x120] sm:$0xff]
    %v117 = vld [vmem:[%s2 + $0x128] sm:$0xff]
    %v118 = vld [vmem:[%s2 + $0x130] sm:$0xff]
    %v119 = vld [vmem:[%s2 + $0x138] sm:$0xff]
    %v120 = vld [vmem:[%s2 + $0x140] sm:$0xff]
    %v121 = vld [vmem:[%s2 + $0x148] sm:$0xff]
    %v122 = vld [vmem:[%s2 + $0x150] sm:$0xff]
    %v123 = vld [vmem:[%s2 + $0x158] sm:$0xff]
    %v124 = vld [vmem:[%s2 + $0x160] sm:$0xff]
    %v125 = vld [vmem:[%s2 + $0x168] sm:$0xff]
    %v126 = vld [vmem:[%s2 + $0x170] sm:$0xff]
    %v127 = vld [vmem:[%s2 + $0x178] sm:$0xff]
    %v128 = vld [vmem:[%s2 + $0x180] sm:$0xff]
    %v129 = vld [vmem:[%s2 + $0x188] sm:$0xff]
    %v130 = vld [vmem:[%s2 + $0x190] sm:$0xff]
    %v131 = vld [vmem:[%s2 + $0x198] sm:$0xff]
    %v132 = vld [vmem:[%s2 + $0x1a0] sm:$0xff]
    %v133 = vld [vmem:[%s2 + $0x1a8] sm:$0xff]
    %v134 = vld [vmem:[%s2 + $0x1b0] sm:$0xff]
    %v135 = vld [vmem:[%s2 + $0x1b8] sm:$0xff]
    %v136 = vld [vmem:[%s2 + $0x1c0] sm:$0xff]
    %v137 = vld [vmem:[%s2 + $0x1c8] sm:$0xff]
    %v138 = vld [vmem:[%s2 + $0x1d0] sm:$0xff]
    %v139 = vld [vmem:[%s2 + $0x1d8] sm:$0xff]
    %v140 = vld [vmem:[%s2 + $0x1e0] sm:$0xff]
    %v141 = vld [vmem:[%s2 + $0x1e8] sm:$0xff]
    %v142 = vld [vmem:[%s2 + $0x1f0] sm:$0xff]
    %v143 = vld [vmem:[%s2 + $0x1f8] sm:$0xff]
    %v144 = vld [vmem:[%s2 + $0x200] sm:$0xff]
    %v145 = vld [vmem:[%s2 + $0x208] sm:$0xff]
    %v146 = vld [vmem:[%s2 + $0x210] sm:$0xff]
    %v147 = vld [vmem:[%s2 + $0x218] sm:$0xff]
    %v148 = vld [vmem:[%s2 + $0x220] sm:$0xff]
    %v149 = vld [vmem:[%s2 + $0x228] sm:$0xff]
    %v150 = vld [vmem:[%s2 + $0x230] sm:$0xff]
    %v151 = vld [vmem:[%s2 + $0x238] sm:$0xff]
    %v152 = vld [vmem:[%s2 + $0x240] sm:$0xff]
    %v153 = vld [vmem:[%s2 + $0x248] sm:$0xff]
    %v154 = vld [vmem:[%s2 + $0x250] sm:$0xff]
    %v155 = vld [vmem:[%s2 + $0x258] sm:$0xff]
    %v156 = vld [vmem:[%s2 + $0x260] sm:$0xff]
    %v157 = vld [vmem:[%s2 + $0x268] sm:$0xff]
    %v158 = vld [vmem:[%s2 + $0x270] sm:$0xff]
    %v159 = vld [vmem:[%s2 + $0x278] sm:$0xff]
    %v160 = vld [vmem:[%s2 + $0x280] sm:$0xff]
    %v161 = vld [vmem:[%s2 + $0x288] sm:$0xff]
    %v162 = vld [vmem:[%s2 + $0x290] sm:$0xff]
    %v163 = vld [vmem:[%s2 + $0x298] sm:$0xff]
    %v164 = vld [vmem:[%s2 + $0x2a0] sm:$0xff]
    %v165 = vld [vmem:[%s2 + $0x2a8] sm:$0xff]
    %v166 = vld [vmem:[%s2 + $0x2b0] sm:$0xff]
    %v167 = vld [vmem:[%s2 + $0x2b8] sm:$0xff]
    %v168 = vld [vmem:[%s2 + $0x2c0] sm:$0xff]
    %v169 = vld [vmem:[%s2 + $0x2c8] sm:$0xff]
    %v170 = vld [vmem:[%s2 + $0x2d0] sm:$0xff]
    %v171 = vld [vmem:[%s2 + $0x2d8] sm:$0xff]
    %v172 = vld [vmem:[%s2 + $0x2e0] sm:$0xff]
    %v173 = vld [vmem:[%s2 + $0x2e8] sm:$0xff]
    %v174 = vld [vmem:[%s2 + $0x2f0] sm:$0xff]
    %v175 = vld [vmem:[%s2 + $0x2f8] sm:$0xff]
    %v176 = vld [vmem:[%s2 + $0x300] sm:$0xff]
    %v177 = vld [vmem:[%s2 + $0x308] sm:$0xff]
    %v178 = vld [vmem:[%s2 + $0x310] sm:$0xff]
    %v179 = vld [vmem:[%s2 + $0x318] sm:$0xff]
    %v180 = vld [vmem:[%s2 + $0x320] sm:$0xff]
    %v181 = vld [vmem:[%s2 + $0x328] sm:$0xff]
    %v182 = vld [vmem:[%s2 + $0x330] sm:$0xff]
    %v183 = vld [vmem:[%s2 + $0x338] sm:$0xff]
    %v184 = vld [vmem:[%s2 + $0x340] sm:$0xff]
    %v185 = vld [vmem:[%s2 + $0x348] sm:$0xff]
    %v186 = vld [vmem:[%s2 + $0x350] sm:$0xff]
    %v187 = vld [vmem:[%s2 + $0x358] sm:$0xff]
    %v188 = vld [vmem:[%s2 + $0x360] sm:$0xff]
    %v189 = vld [vmem:[%s2 + $0x368] sm:$0xff]
    %v190 = vld [vmem:[%s2 + $0x370] sm:$0xff]
    %v191 = vld [vmem:[%s2 + $0x378] sm:$0xff]
    %v192 = vld [vmem:[%s2 + $0x380] sm:$0xff]
    %v193 = vld [vmem:[%s2 + $0x388] sm:$0xff]
    %v194 = vld [vmem:[%s2 + $0x390] sm:$0xff]
    %v195 = vld [vmem:[%s2 + $0x398] sm:$0xff]
    %v196 = vld [vmem:[%s2 + $0x3a0] sm:$0xff]
    %v197 = vld [vmem:[%s2 + $0x3a8] sm:$0xff]
    %v198 = vld [vmem:[%s2 + $0x3b0] sm:$0xff]
    %v199 = vld [vmem:[%s2 + $0x3b8] sm:$0xff]
    %v200 = vld [vmem:[%s2 + $0x3c0] sm:$0xff]
    %v201 = vld [vmem:[%s2 + $0x3c8] sm:$0xff]
    %v202 = vld [vmem:[%s2 + $0x3d0] sm:$0xff]
    %v203 = vld [vmem:[%s2 + $0x3d8] sm:$0xff]
    %v204 = vld [vmem:[%s2 + $0x3e0] sm:$0xff]
    %v205 = vld [vmem:[%s2 + $0x3e8] sm:$0xff]
    %v206 = vld [vmem:[%s2 + $0x3f0] sm:$0xff]
    %v207 = vld [vmem:[%s2 + $0x3f8] sm:$0xff]
    %v208 = vld [vmem:[%s3] sm:$0x3]
    %v210 = vperm.slane %v208, 0
    %v211 = vperm.slane %v208, 1
    %v222 = vunpack.c.l.b16 %v72
    %v223 = vunpack.c.h.b16 %v72
    %v224 = vunpack.c.l.b16 %v73
    %v225 = vunpack.c.h.b16 %v73
    %v226 = vunpack.c.l.b16 %v74
    %v227 = vunpack.c.h.b16 %v74
    %v228 = vunpack.c.l.b16 %v75
    %v229 = vunpack.c.h.b16 %v75
    %v230 = vunpack.c.l.b16 %v76
    %v231 = vunpack.c.h.b16 %v76
    %v232 = vunpack.c.l.b16 %v77
    %v233 = vunpack.c.h.b16 %v77
    %v234 = vunpack.c.l.b16 %v78
    %v235 = vunpack.c.h.b16 %v78
    %v236 = vunpack.c.l.b16 %v79
    %v237 = vunpack.c.h.b16 %v79
    %v238 = vpack.c.b16 %v230, %v222
    %v239 = vpack.c.b16 %v231, %v223
    %v240 = vpack.c.b16 %v232, %v224
    %v241 = vpack.c.b16 %v233, %v225
    %v242 = vpack.c.b16 %v234, %v226
    %v243 = vpack.c.b16 %v235, %v227
    %v244 = vpack.c.b16 %v236, %v228
    %v245 = vpack.c.b16 %v237, %v229
    %v382 = vunpack.c.l.b16 %v80
    %v383 = vunpack.c.h.b16 %v80
    %v384 = vunpack.c.l.b16 %v81
    %v385 = vunpack.c.h.b16 %v81
    %v386 = vunpack.c.l.b16 %v82
    %v387 = vunpack.c.h.b16 %v82
    %v388 = vunpack.c.l.b16 %v83
    %v389 = vunpack.c.h.b16 %v83
    %v390 = vunpack.c.l.b16 %v84
    %v391 = vunpack.c.h.b16 %v84
    %v392 = vunpack.c.l.b16 %v85
    %v393 = vunpack.c.h.b16 %v85
    %v394 = vunpack.c.l.b16 %v86
    %v395 = vunpack.c.h.b16 %v86
    %v396 = vunpack.c.l.b16 %v87
    %v397 = vunpack.c.h.b16 %v87
    %v398 = vunpack.c.l.b16 %v88
    %v399 = vunpack.c.h.b16 %v88
    %v400 = vunpack.c.l.b16 %v89
    %v401 = vunpack.c.h.b16 %v89
    %v402 = vunpack.c.l.b16 %v90
    %v403 = vunpack.c.h.b16 %v90
    %v404 = vunpack.c.l.b16 %v91
    %v405 = vunpack.c.h.b16 %v91
    %v406 = vunpack.c.l.b16 %v92
    %v407 = vunpack.c.h.b16 %v92
    %v408 = vunpack.c.l.b16 %v93
    %v409 = vunpack.c.h.b16 %v93
    %v410 = vunpack.c.l.b16 %v94
    %v411 = vunpack.c.h.b16 %v94
    %v412 = vunpack.c.l.b16 %v95
    %v413 = vunpack.c.h.b16 %v95
    %v414 = vunpack.c.l.b16 %v96
    %v415 = vunpack.c.h.b16 %v96
    %v416 = vunpack.c.l.b16 %v97
    %v417 = vunpack.c.h.b16 %v97
    %v418 = vunpack.c.l.b16 %v98
    %v419 = vunpack.c.h.b16 %v98
    %v420 = vunpack.c.l.b16 %v99
    %v421 = vunpack.c.h.b16 %v99
    %v422 = vunpack.c.l.b16 %v100
    %v423 = vunpack.c.h.b16 %v100
    %v424 = vunpack.c.l.b16 %v101
    %v425 = vunpack.c.h.b16 %v101
    %v426 = vunpack.c.l.b16 %v102
    %v427 = vunpack.c.h.b16 %v102
    %v428 = vunpack.c.l.b16 %v103
    %v429 = vunpack.c.h.b16 %v103
    %v430 = vunpack.c.l.b16 %v104
    %v431 = vunpack.c.h.b16 %v104
    %v432 = vunpack.c.l.b16 %v105
    %v433 = vunpack.c.h.b16 %v105
    %v434 = vunpack.c.l.b16 %v106
    %v435 = vunpack.c.h.b16 %v106
    %v436 = vunpack.c.l.b16 %v107
    %v437 = vunpack.c.h.b16 %v107
    %v438 = vunpack.c.l.b16 %v108
    %v439 = vunpack.c.h.b16 %v108
    %v440 = vunpack.c.l.b16 %v109
    %v441 = vunpack.c.h.b16 %v109
    %v442 = vunpack.c.l.b16 %v110
    %v443 = vunpack.c.h.b16 %v110
    %v444 = vunpack.c.l.b16 %v111
    %v445 = vunpack.c.h.b16 %v111
    %v446 = vunpack.c.l.b16 %v112
    %v447 = vunpack.c.h.b16 %v112
    %v448 = vunpack.c.l.b16 %v113
    %v449 = vunpack.c.h.b16 %v113
    %v450 = vunpack.c.l.b16 %v114
    %v451 = vunpack.c.h.b16 %v114
    %v452 = vunpack.c.l.b16 %v115
    %v453 = vunpack.c.h.b16 %v115
    %v454 = vunpack.c.l.b16 %v116
    %v455 = vunpack.c.h.b16 %v116
    %v456 = vunpack.c.l.b16 %v117
    %v457 = vunpack.c.h.b16 %v117
    %v458 = vunpack.c.l.b16 %v118
    %v459 = vunpack.c.h.b16 %v118
    %v460 = vunpack.c.l.b16 %v119
    %v461 = vunpack.c.h.b16 %v119
    %v462 = vunpack.c.l.b16 %v120
    %v463 = vunpack.c.h.b16 %v120
    %v464 = vunpack.c.l.b16 %v121
    %v465 = vunpack.c.h.b16 %v121
    %v466 = vunpack.c.l.b16 %v122
    %v467 = vunpack.c.h.b16 %v122
    %v468 = vunpack.c.l.b16 %v123
    %v469 = vunpack.c.h.b16 %v123
    %v470 = vunpack.c.l.b16 %v124
    %v471 = vunpack.c.h.b16 %v124
    %v472 = vunpack.c.l.b16 %v125
    %v473 = vunpack.c.h.b16 %v125
    %v474 = vunpack.c.l.b16 %v126
    %v475 = vunpack.c.h.b16 %v126
    %v476 = vunpack.c.l.b16 %v127
    %v477 = vunpack.c.h.b16 %v127
    %v478 = vunpack.c.l.b16 %v128
    %v479 = vunpack.c.h.b16 %v128
    %v480 = vunpack.c.l.b16 %v129
    %v481 = vunpack.c.h.b16 %v129
    %v482 = vunpack.c.l.b16 %v130
    %v483 = vunpack.c.h.b16 %v130
    %v484 = vunpack.c.l.b16 %v131
    %v485 = vunpack.c.h.b16 %v131
    %v486 = vunpack.c.l.b16 %v132
    %v487 = vunpack.c.h.b16 %v132
    %v488 = vunpack.c.l.b16 %v133
    %v489 = vunpack.c.h.b16 %v133
    %v490 = vunpack.c.l.b16 %v134
    %v491 = vunpack.c.h.b16 %v134
    %v492 = vunpack.c.l.b16 %v135
    %v493 = vunpack.c.h.b16 %v135
    %v494 = vunpack.c.l.b16 %v136
    %v495 = vunpack.c.h.b16 %v136
    %v496 = vunpack.c.l.b16 %v137
    %v497 = vunpack.c.h.b16 %v137
    %v498 = vunpack.c.l.b16 %v138
    %v499 = vunpack.c.h.b16 %v138
    %v500 = vunpack.c.l.b16 %v139
    %v501 = vunpack.c.h.b16 %v139
    %v502 = vunpack.c.l.b16 %v140
    %v503 = vunpack.c.h.b16 %v140
    %v504 = vunpack.c.l.b16 %v141
    %v505 = vunpack.c.h.b16 %v141
    %v506 = vunpack.c.l.b16 %v142
    %v507 = vunpack.c.h.b16 %v142
    %v508 = vunpack.c.l.b16 %v143
    %v509 = vunpack.c.h.b16 %v143
    %v510 = vunpack.c.l.b16 %v144
    %v511 = vunpack.c.h.b16 %v144
    %v512 = vunpack.c.l.b16 %v145
    %v513 = vunpack.c.h.b16 %v145
    %v514 = vunpack.c.l.b16 %v146
    %v515 = vunpack.c.h.b16 %v146
    %v516 = vunpack.c.l.b16 %v147
    %v517 = vunpack.c.h.b16 %v147
    %v518 = vunpack.c.l.b16 %v148
    %v519 = vunpack.c.h.b16 %v148
    %v520 = vunpack.c.l.b16 %v149
    %v521 = vunpack.c.h.b16 %v149
    %v522 = vunpack.c.l.b16 %v150
    %v523 = vunpack.c.h.b16 %v150
    %v524 = vunpack.c.l.b16 %v151
    %v525 = vunpack.c.h.b16 %v151
    %v526 = vunpack.c.l.b16 %v152
    %v527 = vunpack.c.h.b16 %v152
    %v528 = vunpack.c.l.b16 %v153
    %v529 = vunpack.c.h.b16 %v153
    %v530 = vunpack.c.l.b16 %v154
    %v531 = vunpack.c.h.b16 %v154
    %v532 = vunpack.c.l.b16 %v155
    %v533 = vunpack.c.h.b16 %v155
    %v534 = vunpack.c.l.b16 %v156
    %v535 = vunpack.c.h.b16 %v156
    %v536 = vunpack.c.l.b16 %v157
    %v537 = vunpack.c.h.b16 %v157
    %v538 = vunpack.c.l.b16 %v158
    %v539 = vunpack.c.h.b16 %v158
    %v540 = vunpack.c.l.b16 %v159
    %v541 = vunpack.c.h.b16 %v159
    %v542 = vunpack.c.l.b16 %v160
    %v543 = vunpack.c.h.b16 %v160
    %v544 = vunpack.c.l.b16 %v161
    %v545 = vunpack.c.h.b16 %v161
    %v546 = vunpack.c.l.b16 %v162
    %v547 = vunpack.c.h.b16 %v162
    %v548 = vunpack.c.l.b16 %v163
    %v549 = vunpack.c.h.b16 %v163
    %v550 = vunpack.c.l.b16 %v164
    %v551 = vunpack.c.h.b16 %v164
    %v552 = vunpack.c.l.b16 %v165
    %v553 = vunpack.c.h.b16 %v165
    %v554 = vunpack.c.l.b16 %v166
    %v555 = vunpack.c.h.b16 %v166
    %v556 = vunpack.c.l.b16 %v167
    %v557 = vunpack.c.h.b16 %v167
    %v558 = vunpack.c.l.b16 %v168
    %v559 = vunpack.c.h.b16 %v168
    %v560 = vunpack.c.l.b16 %v169
    %v561 = vunpack.c.h.b16 %v169
    %v562 = vunpack.c.l.b16 %v170
    %v563 = vunpack.c.h.b16 %v170
    %v564 = vunpack.c.l.b16 %v171
    %v565 = vunpack.c.h.b16 %v171
    %v566 = vunpack.c.l.b16 %v172
    %v567 = vunpack.c.h.b16 %v172
    %v568 = vunpack.c.l.b16 %v173
    %v569 = vunpack.c.h.b16 %v173
    %v570 = vunpack.c.l.b16 %v174
    %v571 = vunpack.c.h.b16 %v174
    %v572 = vunpack.c.l.b16 %v175
    %v573 = vunpack.c.h.b16 %v175
    %v574 = vunpack.c.l.b16 %v176
    %v575 = vunpack.c.h.b16 %v176
    %v576 = vunpack.c.l.b16 %v177
    %v577 = vunpack.c.h.b16 %v177
    %v578 = vunpack.c.l.b16 %v178
    %v579 = vunpack.c.h.b16 %v178
    %v580 = vunpack.c.l.b16 %v179
    %v581 = vunpack.c.h.b16 %v179
    %v582 = vunpack.c.l.b16 %v180
    %v583 = vunpack.c.h.b16 %v180
    %v584 = vunpack.c.l.b16 %v181
    %v585 = vunpack.c.h.b16 %v181
    %v586 = vunpack.c.l.b16 %v182
    %v587 = vunpack.c.h.b16 %v182
    %v588 = vunpack.c.l.b16 %v183
    %v589 = vunpack.c.h.b16 %v183
    %v590 = vunpack.c.l.b16 %v184
    %v591 = vunpack.c.h.b16 %v184
    %v592 = vunpack.c.l.b16 %v185
    %v593 = vunpack.c.h.b16 %v185
    %v594 = vunpack.c.l.b16 %v186
    %v595 = vunpack.c.h.b16 %v186
    %v596 = vunpack.c.l.b16 %v187
    %v597 = vunpack.c.h.b16 %v187
    %v598 = vunpack.c.l.b16 %v188
    %v599 = vunpack.c.h.b16 %v188
    %v600 = vunpack.c.l.b16 %v189
    %v601 = vunpack.c.h.b16 %v189
    %v602 = vunpack.c.l.b16 %v190
    %v603 = vunpack.c.h.b16 %v190
    %v604 = vunpack.c.l.b16 %v191
    %v605 = vunpack.c.h.b16 %v191
    %v606 = vunpack.c.l.b16 %v192
    %v607 = vunpack.c.h.b16 %v192
    %v608 = vunpack.c.l.b16 %v193
    %v609 = vunpack.c.h.b16 %v193
    %v610 = vunpack.c.l.b16 %v194
    %v611 = vunpack.c.h.b16 %v194
    %v612 = vunpack.c.l.b16 %v195
    %v613 = vunpack.c.h.b16 %v195
    %v614 = vunpack.c.l.b16 %v196
    %v615 = vunpack.c.h.b16 %v196
    %v616 = vunpack.c.l.b16 %v197
    %v617 = vunpack.c.h.b16 %v197
    %v618 = vunpack.c.l.b16 %v198
    %v619 = vunpack.c.h.b16 %v198
    %v620 = vunpack.c.l.b16 %v199
    %v621 = vunpack.c.h.b16 %v199
    %v622 = vunpack.c.l.b16 %v200
    %v623 = vunpack.c.h.b16 %v200
    %v624 = vunpack.c.l.b16 %v201
    %v625 = vunpack.c.h.b16 %v201
    %v626 = vunpack.c.l.b16 %v202
    %v627 = vunpack.c.h.b16 %v202
    %v628 = vunpack.c.l.b16 %v203
    %v629 = vunpack.c.h.b16 %v203
    %v630 = vunpack.c.l.b16 %v204
    %v631 = vunpack.c.h.b16 %v204
    %v632 = vunpack.c.l.b16 %v205
    %v633 = vunpack.c.h.b16 %v205
    %v634 = vunpack.c.l.b16 %v206
    %v635 = vunpack.c.h.b16 %v206
    %v636 = vunpack.c.l.b16 %v207
    %v637 = vunpack.c.h.b16 %v207
    %v638 = vpack.c.b16 %v384, %v382
    %v639 = vpack.c.b16 %v385, %v383
    %v640 = vpack.c.b16 %v388, %v386
    %v641 = vpack.c.b16 %v389, %v387
    %v642 = vpack.c.b16 %v392, %v390
    %v643 = vpack.c.b16 %v393, %v391
    %v644 = vpack.c.b16 %v396, %v394
    %v645 = vpack.c.b16 %v397, %v395
    %v646 = vpack.c.b16 %v400, %v398
    %v647 = vpack.c.b16 %v401, %v399
    %v648 = vpack.c.b16 %v404, %v402
    %v649 = vpack.c.b16 %v405, %v403
    %v650 = vpack.c.b16 %v408, %v406
    %v651 = vpack.c.b16 %v409, %v407
    %v652 = vpack.c.b16 %v412, %v410
    %v653 = vpack.c.b16 %v413, %v411
    %v654 = vpack.c.b16 %v416, %v414
    %v655 = vpack.c.b16 %v417, %v415
    %v656 = vpack.c.b16 %v420, %v418
    %v657 = vpack.c.b16 %v421, %v419
    %v658 = vpack.c.b16 %v424, %v422
    %v659 = vpack.c.b16 %v425, %v423
    %v660 = vpack.c.b16 %v428, %v426
    %v661 = vpack.c.b16 %v429, %v427
    %v662 = vpack.c.b16 %v432, %v430
    %v663 = vpack.c.b16 %v433, %v431
    %v664 = vpack.c.b16 %v436, %v434
    %v665 = vpack.c.b16 %v437, %v435
    %v666 = vpack.c.b16 %v440, %v438
    %v667 = vpack.c.b16 %v441, %v439
    %v668 = vpack.c.b16 %v444, %v442
    %v669 = vpack.c.b16 %v445, %v443
    %v670 = vpack.c.b16 %v448, %v446
    %v671 = vpack.c.b16 %v449, %v447
    %v672 = vpack.c.b16 %v452, %v450
    %v673 = vpack.c.b16 %v453, %v451
    %v674 = vpack.c.b16 %v456, %v454
    %v675 = vpack.c.b16 %v457, %v455
    %v676 = vpack.c.b16 %v460, %v458
    %v677 = vpack.c.b16 %v461, %v459
    %v678 = vpack.c.b16 %v464, %v462
    %v679 = vpack.c.b16 %v465, %v463
    %v680 = vpack.c.b16 %v468, %v466
    %v681 = vpack.c.b16 %v469, %v467
    %v682 = vpack.c.b16 %v472, %v470
    %v683 = vpack.c.b16 %v473, %v471
    %v684 = vpack.c.b16 %v476, %v474
    %v685 = vpack.c.b16 %v477, %v475
    %v686 = vpack.c.b16 %v480, %v478
    %v687 = vpack.c.b16 %v481, %v479
    %v688 = vpack.c.b16 %v484, %v482
    %v689 = vpack.c.b16 %v485, %v483
    %v690 = vpack.c.b16 %v488, %v486
    %v691 = vpack.c.b16 %v489, %v487
    %v692 = vpack.c.b16 %v492, %v490
    %v693 = vpack.c.b16 %v493, %v491
    %v694 = vpack.c.b16 %v496, %v494
    %v695 = vpack.c.b16 %v497, %v495
    %v696 = vpack.c.b16 %v500, %v498
    %v697 = vpack.c.b16 %v501, %v499
    %v698 = vpack.c.b16 %v504, %v502
    %v699 = vpack.c.b16 %v505, %v503
    %v700 = vpack.c.b16 %v508, %v506
    %v701 = vpack.c.b16 %v509, %v507
    %v702 = vpack.c.b16 %v512, %v510
    %v703 = vpack.c.b16 %v513, %v511
    %v704 = vpack.c.b16 %v516, %v514
    %v705 = vpack.c.b16 %v517, %v515
    %v706 = vpack.c.b16 %v520, %v518
    %v707 = vpack.c.b16 %v521, %v519
    %v708 = vpack.c.b16 %v524, %v522
    %v709 = vpack.c.b16 %v525, %v523
    %v710 = vpack.c.b16 %v528, %v526
    %v711 = vpack.c.b16 %v529, %v527
    %v712 = vpack.c.b16 %v532, %v530
    %v713 = vpack.c.b16 %v533, %v531
    %v714 = vpack.c.b16 %v536, %v534
    %v715 = vpack.c.b16 %v537, %v535
    %v716 = vpack.c.b16 %v540, %v538
    %v717 = vpack.c.b16 %v541, %v539
    %v718 = vpack.c.b16 %v544, %v542
    %v719 = vpack.c.b16 %v545, %v543
    %v720 = vpack.c.b16 %v548, %v546
    %v721 = vpack.c.b16 %v549, %v547
    %v722 = vpack.c.b16 %v552, %v550
    %v723 = vpack.c.b16 %v553, %v551
    %v724 = vpack.c.b16 %v556, %v554
    %v725 = vpack.c.b16 %v557, %v555
    %v726 = vpack.c.b16 %v560, %v558
    %v727 = vpack.c.b16 %v561, %v559
    %v728 = vpack.c.b16 %v564, %v562
    %v729 = vpack.c.b16 %v565, %v563
    %v730 = vpack.c.b16 %v568, %v566
    %v731 = vpack.c.b16 %v569, %v567
    %v732 = vpack.c.b16 %v572, %v570
    %v733 = vpack.c.b16 %v573, %v571
    %v734 = vpack.c.b16 %v576, %v574
    %v735 = vpack.c.b16 %v577, %v575
    %v736 = vpack.c.b16 %v580, %v578
    %v737 = vpack.c.b16 %v581, %v579
    %v738 = vpack.c.b16 %v584, %v582
    %v739 = vpack.c.b16 %v585, %v583
    %v740 = vpack.c.b16 %v588, %v586
    %v741 = vpack.c.b16 %v589, %v587
    %v742 = vpack.c.b16 %v592, %v590
    %v743 = vpack.c.b16 %v593, %v591
    %v744 = vpack.c.b16 %v596, %v594
    %v745 = vpack.c.b16 %v597, %v595
    %v746 = vpack.c.b16 %v600, %v598
    %v747 = vpack.c.b16 %v601, %v599
    %v748 = vpack.c.b16 %v604, %v602
    %v749 = vpack.c.b16 %v605, %v603
    %v750 = vpack.c.b16 %v608, %v606
    %v751 = vpack.c.b16 %v609, %v607
    %v752 = vpack.c.b16 %v612, %v610
    %v753 = vpack.c.b16 %v613, %v611
    %v754 = vpack.c.b16 %v616, %v614
    %v755 = vpack.c.b16 %v617, %v615
    %v756 = vpack.c.b16 %v620, %v618
    %v757 = vpack.c.b16 %v621, %v619
    %v758 = vpack.c.b16 %v624, %v622
    %v759 = vpack.c.b16 %v625, %v623
    %v760 = vpack.c.b16 %v628, %v626
    %v761 = vpack.c.b16 %v629, %v627
    %v762 = vpack.c.b16 %v632, %v630
    %v763 = vpack.c.b16 %v633, %v631
    %v764 = vpack.c.b16 %v636, %v634
    %v765 = vpack.c.b16 %v637, %v635
    %894 = vmatpush.bf16.msra.mxu0 %v652
    %895 = vmatpush.bf16.msra.mxu0 %v650
    %896 = vmatpush.bf16.msra.mxu0 %v648
    %897 = vmatpush.bf16.msra.mxu0 %v646
    %898 = vmatpush.bf16.msra.mxu0 %v644
    %899 = vmatpush.bf16.msra.mxu0 %v642
    %900 = vmatpush.bf16.msra.mxu0 %v640
    %901 = vmatpush.bf16.msra.mxu0 %v638
    %902 = vmatmul.bf16.gmra.mxu0 %v238
    %v903 = vpop.f32.mrf.mxu0
    %v904 = vadd.f32 %v210, %v903
    %v905 = vpop.f32.mrf.mxu0
    %v906 = vadd.f32 %v210, %v905
    %907 = vdwg.mxu0
    %908 = vmatpush.bf16.msra.mxu0 %v668
    %909 = vmatpush.bf16.msra.mxu0 %v666
    %910 = vmatpush.bf16.msra.mxu0 %v664
    %911 = vmatpush.bf16.msra.mxu0 %v662
    %912 = vmatpush.bf16.msra.mxu0 %v660
    %913 = vmatpush.bf16.msra.mxu0 %v658
    %914 = vmatpush.bf16.msra.mxu0 %v656
    %915 = vmatpush.bf16.msra.mxu0 %v654
    %916 = vmatmul.bf16.gmra.mxu0 %v239
    %v917 = vpop.f32.mrf.mxu0
    %v918 = vadd.f32 %v904, %v917
    %v919 = vpop.f32.mrf.mxu0
    %v920 = vadd.f32 %v906, %v919
    %921 = vdwg.mxu0
    %922 = vmatpush.bf16.msra.mxu0 %v684
    %923 = vmatpush.bf16.msra.mxu0 %v682
    %924 = vmatpush.bf16.msra.mxu0 %v680
    %925 = vmatpush.bf16.msra.mxu0 %v678
    %926 = vmatpush.bf16.msra.mxu0 %v676
    %927 = vmatpush.bf16.msra.mxu0 %v674
    %928 = vmatpush.bf16.msra.mxu0 %v672
    %929 = vmatpush.bf16.msra.mxu0 %v670
    %930 = vmatmul.bf16.gmra.mxu0 %v240
    %v931 = vpop.f32.mrf.mxu0
    %v932 = vadd.f32 %v918, %v931
    %v933 = vpop.f32.mrf.mxu0
    %v934 = vadd.f32 %v920, %v933
    %935 = vdwg.mxu0
    %936 = vmatpush.bf16.msra.mxu0 %v700
    %937 = vmatpush.bf16.msra.mxu0 %v698
    %938 = vmatpush.bf16.msra.mxu0 %v696
    %939 = vmatpush.bf16.msra.mxu0 %v694
    %940 = vmatpush.bf16.msra.mxu0 %v692
    %941 = vmatpush.bf16.msra.mxu0 %v690
    %942 = vmatpush.bf16.msra.mxu0 %v688
    %943 = vmatpush.bf16.msra.mxu0 %v686
    %944 = vmatmul.bf16.gmra.mxu0 %v241
    %v945 = vpop.f32.mrf.mxu0
    %v946 = vadd.f32 %v932, %v945
    %v947 = vpop.f32.mrf.mxu0
    %v948 = vadd.f32 %v934, %v947
    %949 = vdwg.mxu0
    %950 = vmatpush.bf16.msra.mxu0 %v716
    %951 = vmatpush.bf16.msra.mxu0 %v714
    %952 = vmatpush.bf16.msra.mxu0 %v712
    %953 = vmatpush.bf16.msra.mxu0 %v710
    %954 = vmatpush.bf16.msra.mxu0 %v708
    %955 = vmatpush.bf16.msra.mxu0 %v706
    %956 = vmatpush.bf16.msra.mxu0 %v704
    %957 = vmatpush.bf16.msra.mxu0 %v702
    %958 = vmatmul.bf16.gmra.mxu0 %v242
    %v959 = vpop.f32.mrf.mxu0
    %v960 = vadd.f32 %v946, %v959
    %v961 = vpop.f32.mrf.mxu0
    %v962 = vadd.f32 %v948, %v961
    %963 = vdwg.mxu0
    %964 = vmatpush.bf16.msra.mxu0 %v732
    %965 = vmatpush.bf16.msra.mxu0 %v730
    %966 = vmatpush.bf16.msra.mxu0 %v728
    %967 = vmatpush.bf16.msra.mxu0 %v726
    %968 = vmatpush.bf16.msra.mxu0 %v724
    %969 = vmatpush.bf16.msra.mxu0 %v722
    %970 = vmatpush.bf16.msra.mxu0 %v720
    %971 = vmatpush.bf16.msra.mxu0 %v718
    %972 = vmatmul.bf16.gmra.mxu0 %v243
    %v973 = vpop.f32.mrf.mxu0
    %v974 = vadd.f32 %v960, %v973
    %v975 = vpop.f32.mrf.mxu0
    %v976 = vadd.f32 %v962, %v975
    %977 = vdwg.mxu0
    %978 = vmatpush.bf16.msra.mxu0 %v748
    %979 = vmatpush.bf16.msra.mxu0 %v746
    %980 = vmatpush.bf16.msra.mxu0 %v744
    %981 = vmatpush.bf16.msra.mxu0 %v742
    %982 = vmatpush.bf16.msra.mxu0 %v740
    %983 = vmatpush.bf16.msra.mxu0 %v738
    %984 = vmatpush.bf16.msra.mxu0 %v736
    %985 = vmatpush.bf16.msra.mxu0 %v734
    %986 = vmatmul.bf16.gmra.mxu0 %v244
    %v987 = vpop.f32.mrf.mxu0
    %v988 = vadd.f32 %v974, %v987
    %v989 = vpop.f32.mrf.mxu0
    %v990 = vadd.f32 %v976, %v989
    %991 = vdwg.mxu0
    %992 = vmatpush.bf16.msra.mxu0 %v764
    %993 = vmatpush.bf16.msra.mxu0 %v762
    %994 = vmatpush.bf16.msra.mxu0 %v760
    %995 = vmatpush.bf16.msra.mxu0 %v758
    %996 = vmatpush.bf16.msra.mxu0 %v756
    %997 = vmatpush.bf16.msra.mxu0 %v754
    %998 = vmatpush.bf16.msra.mxu0 %v752
    %999 = vmatpush.bf16.msra.mxu0 %v750
    %1000 = vmatmul.bf16.gmra.mxu0 %v245
    %v1001 = vpop.f32.mrf.mxu0
    %v1002 = vadd.f32 %v988, %v1001
    %v1003 = vpop.f32.mrf.mxu0
    %v1004 = vadd.f32 %v990, %v1003
    %1005 = vdwg.mxu0
    %1006 = vmatpush.bf16.msra.mxu0 %v653
    %1007 = vmatpush.bf16.msra.mxu0 %v651
    %1008 = vmatpush.bf16.msra.mxu0 %v649
    %1009 = vmatpush.bf16.msra.mxu0 %v647
    %1010 = vmatpush.bf16.msra.mxu0 %v645
    %1011 = vmatpush.bf16.msra.mxu0 %v643
    %1012 = vmatpush.bf16.msra.mxu0 %v641
    %1013 = vmatpush.bf16.msra.mxu0 %v639
    %1014 = vmatmul.bf16.gmra.mxu0 %v238
    %v1015 = vpop.f32.mrf.mxu0
    %v1016 = vadd.f32 %v211, %v1015
    %v1017 = vpop.f32.mrf.mxu0
    %v1018 = vadd.f32 %v211, %v1017
    %1019 = vdwg.mxu0
    %1020 = vmatpush.bf16.msra.mxu0 %v669
    %1021 = vmatpush.bf16.msra.mxu0 %v667
    %1022 = vmatpush.bf16.msra.mxu0 %v665
    %1023 = vmatpush.bf16.msra.mxu0 %v663
    %1024 = vmatpush.bf16.msra.mxu0 %v661
    %1025 = vmatpush.bf16.msra.mxu0 %v659
    %1026 = vmatpush.bf16.msra.mxu0 %v657
    %1027 = vmatpush.bf16.msra.mxu0 %v655
    %1028 = vmatmul.bf16.gmra.mxu0 %v239
    %v1029 = vpop.f32.mrf.mxu0
    %v1030 = vadd.f32 %v1016, %v1029
    %v1031 = vpop.f32.mrf.mxu0
    %v1032 = vadd.f32 %v1018, %v1031
    %1033 = vdwg.mxu0
    %1034 = vmatpush.bf16.msra.mxu0 %v685
    %1035 = vmatpush.bf16.msra.mxu0 %v683
    %1036 = vmatpush.bf16.msra.mxu0 %v681
    %1037 = vmatpush.bf16.msra.mxu0 %v679
    %1038 = vmatpush.bf16.msra.mxu0 %v677
    %1039 = vmatpush.bf16.msra.mxu0 %v675
    %1040 = vmatpush.bf16.msra.mxu0 %v673
    %1041 = vmatpush.bf16.msra.mxu0 %v671
    %1042 = vmatmul.bf16.gmra.mxu0 %v240
    %v1043 = vpop.f32.mrf.mxu0
    %v1044 = vadd.f32 %v1030, %v1043
    %v1045 = vpop.f32.mrf.mxu0
    %v1046 = vadd.f32 %v1032, %v1045
    %1047 = vdwg.mxu0
    %1048 = vmatpush.bf16.msra.mxu0 %v701
    %1049 = vmatpush.bf16.msra.mxu0 %v699
    %1050 = vmatpush.bf16.msra.mxu0 %v697
    %1051 = vmatpush.bf16.msra.mxu0 %v695
    %1052 = vmatpush.bf16.msra.mxu0 %v693
    %1053 = vmatpush.bf16.msra.mxu0 %v691
    %1054 = vmatpush.bf16.msra.mxu0 %v689
    %1055 = vmatpush.bf16.msra.mxu0 %v687
    %1056 = vmatmul.bf16.gmra.mxu0 %v241
    %v1057 = vpop.f32.mrf.mxu0
    %v1058 = vadd.f32 %v1044, %v1057
    %v1059 = vpop.f32.mrf.mxu0
    %v1060 = vadd.f32 %v1046, %v1059
    %1061 = vdwg.mxu0
    %1062 = vmatpush.bf16.msra.mxu0 %v717
    %1063 = vmatpush.bf16.msra.mxu0 %v715
    %1064 = vmatpush.bf16.msra.mxu0 %v713
    %1065 = vmatpush.bf16.msra.mxu0 %v711
    %1066 = vmatpush.bf16.msra.mxu0 %v709
    %1067 = vmatpush.bf16.msra.mxu0 %v707
    %1068 = vmatpush.bf16.msra.mxu0 %v705
    %1069 = vmatpush.bf16.msra.mxu0 %v703
    %1070 = vmatmul.bf16.gmra.mxu0 %v242
    %v1071 = vpop.f32.mrf.mxu0
    %v1072 = vadd.f32 %v1058, %v1071
    %v1073 = vpop.f32.mrf.mxu0
    %v1074 = vadd.f32 %v1060, %v1073
    %1075 = vdwg.mxu0
    %1076 = vmatpush.bf16.msra.mxu0 %v733
    %1077 = vmatpush.bf16.msra.mxu0 %v731
    %1078 = vmatpush.bf16.msra.mxu0 %v729
    %1079 = vmatpush.bf16.msra.mxu0 %v727
    %1080 = vmatpush.bf16.msra.mxu0 %v725
    %1081 = vmatpush.bf16.msra.mxu0 %v723
    %1082 = vmatpush.bf16.msra.mxu0 %v721
    %1083 = vmatpush.bf16.msra.mxu0 %v719
    %1084 = vmatmul.bf16.gmra.mxu0 %v243
    %v1085 = vpop.f32.mrf.mxu0
    %v1086 = vadd.f32 %v1072, %v1085
    %v1087 = vpop.f32.mrf.mxu0
    %v1088 = vadd.f32 %v1074, %v1087
    %1089 = vdwg.mxu0
    %1090 = vmatpush.bf16.msra.mxu0 %v749
    %1091 = vmatpush.bf16.msra.mxu0 %v747
    %1092 = vmatpush.bf16.msra.mxu0 %v745
    %1093 = vmatpush.bf16.msra.mxu0 %v743
    %1094 = vmatpush.bf16.msra.mxu0 %v741
    %1095 = vmatpush.bf16.msra.mxu0 %v739
    %1096 = vmatpush.bf16.msra.mxu0 %v737
    %1097 = vmatpush.bf16.msra.mxu0 %v735
    %1098 = vmatmul.bf16.gmra.mxu0 %v244
    %v1099 = vpop.f32.mrf.mxu0
    %v1100 = vadd.f32 %v1086, %v1099
    %v1101 = vpop.f32.mrf.mxu0
    %v1102 = vadd.f32 %v1088, %v1101
    %1103 = vdwg.mxu0
    %1104 = vmatpush.bf16.msra.mxu0 %v765
    %1105 = vmatpush.bf16.msra.mxu0 %v763
    %1106 = vmatpush.bf16.msra.mxu0 %v761
    %1107 = vmatpush.bf16.msra.mxu0 %v759
    %1108 = vmatpush.bf16.msra.mxu0 %v757
    %1109 = vmatpush.bf16.msra.mxu0 %v755
    %1110 = vmatpush.bf16.msra.mxu0 %v753
    %1111 = vmatpush.bf16.msra.mxu0 %v751
    %1112 = vmatmul.bf16.gmra.mxu0 %v245
    %v1113 = vpop.f32.mrf.mxu0
    %v1114 = vadd.f32 %v1100, %v1113
    %v1115 = vpop.f32.mrf.mxu0
    %v1116 = vadd.f32 %v1102, %v1115
    %1117 = vdwg.mxu0
    %v1118 = vmax.f32 %v1002, 0.0
    %v1119 = vmax.f32 %v1114, 0.0
    %v1120 = vmax.f32 %v1004, 0.0
    %v1121 = vmax.f32 %v1116, 0.0
    %v1122 = vpack.c.bf16 %v1120, %v1118
    %v1123 = vpack.c.bf16 %v1121, %v1119
    %v1124 = vld [vmem:[#allocation2] sm:$0xff]
    %v1125 = vld [vmem:[#allocation2 + $0x8] sm:$0xff]
    %v1126 = vld [vmem:[#allocation2 + $0x10] sm:$0xff]
    %v1127 = vld [vmem:[#allocation2 + $0x18] sm:$0xff]
    %v1128 = vld [vmem:[#allocation2 + $0x20] sm:$0xff]
    %v1129 = vld [vmem:[#allocation2 + $0x28] sm:$0xff]
    %v1130 = vld [vmem:[#allocation2 + $0x30] sm:$0xff]
    %v1131 = vld [vmem:[#allocation2 + $0x38] sm:$0xff]
    %v1132 = vld [vmem:[#allocation2 + $0x40] sm:$0xff]
    %v1133 = vld [vmem:[#allocation2 + $0x48] sm:$0xff]
    %v1134 = vld [vmem:[#allocation2 + $0x50] sm:$0xff]
    %v1135 = vld [vmem:[#allocation2 + $0x58] sm:$0xff]
    %v1136 = vld [vmem:[#allocation2 + $0x60] sm:$0xff]
    %v1137 = vld [vmem:[#allocation2 + $0x68] sm:$0xff]
    %v1138 = vld [vmem:[#allocation2 + $0x70] sm:$0xff]
    %v1139 = vld [vmem:[#allocation2 + $0x78] sm:$0xff]
    %v1140 = vld [vmem:[#allocation2 + $0x80] sm:$0xff]
    %v1141 = vld [vmem:[#allocation2 + $0x88] sm:$0xff]
    %v1142 = vld [vmem:[#allocation2 + $0x90] sm:$0xff]
    %v1143 = vld [vmem:[#allocation2 + $0x98] sm:$0xff]
    %v1144 = vld [vmem:[#allocation2 + $0xa0] sm:$0xff]
    %v1145 = vld [vmem:[#allocation2 + $0xa8] sm:$0xff]
    %v1146 = vld [vmem:[#allocation2 + $0xb0] sm:$0xff]
    %v1147 = vld [vmem:[#allocation2 + $0xb8] sm:$0xff]
    %v1148 = vld [vmem:[#allocation2 + $0xc0] sm:$0xff]
    %v1149 = vld [vmem:[#allocation2 + $0xc8] sm:$0xff]
    %v1150 = vld [vmem:[#allocation2 + $0xd0] sm:$0xff]
    %v1151 = vld [vmem:[#allocation2 + $0xd8] sm:$0xff]
    %v1152 = vld [vmem:[#allocation2 + $0xe0] sm:$0xff]
    %v1153 = vld [vmem:[#allocation2 + $0xe8] sm:$0xff]
    %v1154 = vld [vmem:[#allocation2 + $0xf0] sm:$0xff]
    %v1155 = vld [vmem:[#allocation2 + $0xf8] sm:$0xff]
    %v1156 = vld [vmem:[%s5] sm:$0x3]
    %v1158 = vperm.slane %v1156, 0
    %v1159 = vperm.slane %v1156, 1
    %v1194 = vunpack.c.l.b16 %v1124
    %v1195 = vunpack.c.h.b16 %v1124
    %v1196 = vunpack.c.l.b16 %v1125
    %v1197 = vunpack.c.h.b16 %v1125
    %v1198 = vunpack.c.l.b16 %v1126
    %v1199 = vunpack.c.h.b16 %v1126
    %v1200 = vunpack.c.l.b16 %v1127
    %v1201 = vunpack.c.h.b16 %v1127
    %v1202 = vunpack.c.l.b16 %v1128
    %v1203 = vunpack.c.h.b16 %v1128
    %v1204 = vunpack.c.l.b16 %v1129
    %v1205 = vunpack.c.h.b16 %v1129
    %v1206 = vunpack.c.l.b16 %v1130
    %v1207 = vunpack.c.h.b16 %v1130
    %v1208 = vunpack.c.l.b16 %v1131
    %v1209 = vunpack.c.h.b16 %v1131
    %v1210 = vunpack.c.l.b16 %v1132
    %v1211 = vunpack.c.h.b16 %v1132
    %v1212 = vunpack.c.l.b16 %v1133
    %v1213 = vunpack.c.h.b16 %v1133
    %v1214 = vunpack.c.l.b16 %v1134
    %v1215 = vunpack.c.h.b16 %v1134
    %v1216 = vunpack.c.l.b16 %v1135
    %v1217 = vunpack.c.h.b16 %v1135
    %v1218 = vunpack.c.l.b16 %v1136
    %v1219 = vunpack.c.h.b16 %v1136
    %v1220 = vunpack.c.l.b16 %v1137
    %v1221 = vunpack.c.h.b16 %v1137
    %v1222 = vunpack.c.l.b16 %v1138
    %v1223 = vunpack.c.h.b16 %v1138
    %v1224 = vunpack.c.l.b16 %v1139
    %v1225 = vunpack.c.h.b16 %v1139
    %v1226 = vunpack.c.l.b16 %v1140
    %v1227 = vunpack.c.h.b16 %v1140
    %v1228 = vunpack.c.l.b16 %v1141
    %v1229 = vunpack.c.h.b16 %v1141
    %v1230 = vunpack.c.l.b16 %v1142
    %v1231 = vunpack.c.h.b16 %v1142
    %v1232 = vunpack.c.l.b16 %v1143
    %v1233 = vunpack.c.h.b16 %v1143
    %v1234 = vunpack.c.l.b16 %v1144
    %v1235 = vunpack.c.h.b16 %v1144
    %v1236 = vunpack.c.l.b16 %v1145
    %v1237 = vunpack.c.h.b16 %v1145
    %v1238 = vunpack.c.l.b16 %v1146
    %v1239 = vunpack.c.h.b16 %v1146
    %v1240 = vunpack.c.l.b16 %v1147
    %v1241 = vunpack.c.h.b16 %v1147
    %v1242 = vunpack.c.l.b16 %v1148
    %v1243 = vunpack.c.h.b16 %v1148
    %v1244 = vunpack.c.l.b16 %v1149
    %v1245 = vunpack.c.h.b16 %v1149
    %v1246 = vunpack.c.l.b16 %v1150
    %v1247 = vunpack.c.h.b16 %v1150
    %v1248 = vunpack.c.l.b16 %v1151
    %v1249 = vunpack.c.h.b16 %v1151
    %v1250 = vunpack.c.l.b16 %v1152
    %v1251 = vunpack.c.h.b16 %v1152
    %v1252 = vunpack.c.l.b16 %v1153
    %v1253 = vunpack.c.h.b16 %v1153
    %v1254 = vunpack.c.l.b16 %v1154
    %v1255 = vunpack.c.h.b16 %v1154
    %v1256 = vunpack.c.l.b16 %v1155
    %v1257 = vunpack.c.h.b16 %v1155
    %v1258 = vpack.c.b16 %v1196, %v1194
    %v1259 = vpack.c.b16 %v1197, %v1195
    %v1260 = vpack.c.b16 %v1200, %v1198
    %v1261 = vpack.c.b16 %v1201, %v1199
    %v1262 = vpack.c.b16 %v1204, %v1202
    %v1263 = vpack.c.b16 %v1205, %v1203
    %v1264 = vpack.c.b16 %v1208, %v1206
    %v1265 = vpack.c.b16 %v1209, %v1207
    %v1266 = vpack.c.b16 %v1212, %v1210
    %v1267 = vpack.c.b16 %v1213, %v1211
    %v1268 = vpack.c.b16 %v1216, %v1214
    %v1269 = vpack.c.b16 %v1217, %v1215
    %v1270 = vpack.c.b16 %v1220, %v1218
    %v1271 = vpack.c.b16 %v1221, %v1219
    %v1272 = vpack.c.b16 %v1224, %v1222
    %v1273 = vpack.c.b16 %v1225, %v1223
    %v1274 = vpack.c.b16 %v1228, %v1226
    %v1275 = vpack.c.b16 %v1229, %v1227
    %v1276 = vpack.c.b16 %v1232, %v1230
    %v1277 = vpack.c.b16 %v1233, %v1231
    %v1278 = vpack.c.b16 %v1236, %v1234
    %v1279 = vpack.c.b16 %v1237, %v1235
    %v1280 = vpack.c.b16 %v1240, %v1238
    %v1281 = vpack.c.b16 %v1241, %v1239
    %v1282 = vpack.c.b16 %v1244, %v1242
    %v1283 = vpack.c.b16 %v1245, %v1243
    %v1284 = vpack.c.b16 %v1248, %v1246
    %v1285 = vpack.c.b16 %v1249, %v1247
    %v1286 = vpack.c.b16 %v1252, %v1250
    %v1287 = vpack.c.b16 %v1253, %v1251
    %v1288 = vpack.c.b16 %v1256, %v1254
    %v1289 = vpack.c.b16 %v1257, %v1255
    %1322 = vmatpush.bf16.msra.mxu0 %v1272
    %1323 = vmatpush.bf16.msra.mxu0 %v1270
    %1324 = vmatpush.bf16.msra.mxu0 %v1268
    %1325 = vmatpush.bf16.msra.mxu0 %v1266
    %1326 = vmatpush.bf16.msra.mxu0 %v1264
    %1327 = vmatpush.bf16.msra.mxu0 %v1262
    %1328 = vmatpush.bf16.msra.mxu0 %v1260
    %1329 = vmatpush.bf16.msra.mxu0 %v1258
    %1330 = vmatmul.bf16.gmra.mxu0 %v1122
    %v1331 = vpop.f32.mrf.mxu0
    %v1332 = vadd.f32 %v1158, %v1331
    %v1333 = vpop.f32.mrf.mxu0
    %v1334 = vadd.f32 %v1158, %v1333
    %1335 = vdwg.mxu0
    %1336 = vmatpush.bf16.msra.mxu0 %v1288
    %1337 = vmatpush.bf16.msra.mxu0 %v1286
    %1338 = vmatpush.bf16.msra.mxu0 %v1284
    %1339 = vmatpush.bf16.msra.mxu0 %v1282
    %1340 = vmatpush.bf16.msra.mxu0 %v1280
    %1341 = vmatpush.bf16.msra.mxu0 %v1278
    %1342 = vmatpush.bf16.msra.mxu0 %v1276
    %1343 = vmatpush.bf16.msra.mxu0 %v1274
    %1344 = vmatmul.bf16.gmra.mxu0 %v1123
    %v1345 = vpop.f32.mrf.mxu0
    %v1346 = vadd.f32 %v1332, %v1345
    %v1347 = vpop.f32.mrf.mxu0
    %v1348 = vadd.f32 %v1334, %v1347
    %1349 = vdwg.mxu0
    %1350 = vmatpush.bf16.msra.mxu0 %v1273
    %1351 = vmatpush.bf16.msra.mxu0 %v1271
    %1352 = vmatpush.bf16.msra.mxu0 %v1269
    %1353 = vmatpush.bf16.msra.mxu0 %v1267
    %1354 = vmatpush.bf16.msra.mxu0 %v1265
    %1355 = vmatpush.bf16.msra.mxu0 %v1263
    %1356 = vmatpush.bf16.msra.mxu0 %v1261
    %1357 = vmatpush.bf16.msra.mxu0 %v1259
    %1358 = vmatmul.bf16.gmra.mxu0 %v1122
    %v1359 = vpop.f32.mrf.mxu0
    %v1360 = vadd.f32 %v1159, %v1359
    %v1361 = vpop.f32.mrf.mxu0
    %v1362 = vadd.f32 %v1159, %v1361
    %1363 = vdwg.mxu0
    %1364 = vmatpush.bf16.msra.mxu0 %v1289
    %1365 = vmatpush.bf16.msra.mxu0 %v1287
    %1366 = vmatpush.bf16.msra.mxu0 %v1285
    %1367 = vmatpush.bf16.msra.mxu0 %v1283
    %1368 = vmatpush.bf16.msra.mxu0 %v1281
    %1369 = vmatpush.bf16.msra.mxu0 %v1279
    %1370 = vmatpush.bf16.msra.mxu0 %v1277
    %1371 = vmatpush.bf16.msra.mxu0 %v1275
    %1372 = vmatmul.bf16.gmra.mxu0 %v1123
    %v1373 = vpop.f32.mrf.mxu0
    %v1374 = vadd.f32 %v1360, %v1373
    %v1375 = vpop.f32.mrf.mxu0
    %v1376 = vadd.f32 %v1362, %v1375
    %1377 = vdwg.mxu0
    %v1378 = vld [vmem:[%s1] sm:$0xff]
    %v1379 = vld [vmem:[%s1 + $0x8] sm:$0xff]
    %v1380 = vmul.f32 %v1374, 0.5
    %v1381 = vmul.f32 %v1376, 0.5
    %v1382 = vmul.f32 %v1380, 1.442695
    %v1383 = vpow.pop %v1382
    %v1384 = vmul.f32 %v1381, 1.442695
    %v1385 = vpow.pop %v1384
    %v1386 = vmul.f32 %v1378, %v1383
    %v1387 = vmul.f32 %v1379, %v1385
    %v1388 = vadd.f32 %v1346, %v1386
    %v1389 = vadd.f32 %v1348, %v1387
    %v1390 = vpack.c.bf16 %v1389, %v1388
    %v1391 = vld [vmem:[#allocation5] sm:$0xff]
    %v1392 = vld [vmem:[#allocation5 + $0x8] sm:$0xff]
    %v1393 = vld [vmem:[#allocation5 + $0x10] sm:$0xff]
    %v1394 = vld [vmem:[#allocation5 + $0x18] sm:$0xff]
    %v1395 = vld [vmem:[#allocation5 + $0x20] sm:$0xff]
    %v1396 = vld [vmem:[#allocation5 + $0x28] sm:$0xff]
    %v1397 = vld [vmem:[#allocation5 + $0x30] sm:$0xff]
    %v1398 = vld [vmem:[#allocation5 + $0x38] sm:$0xff]
    %v1399 = vld [vmem:[#allocation5 + $0x40] sm:$0xff]
    %v1400 = vld [vmem:[#allocation5 + $0x48] sm:$0xff]
    %v1401 = vld [vmem:[#allocation5 + $0x50] sm:$0xff]
    %v1402 = vld [vmem:[#allocation5 + $0x58] sm:$0xff]
    %v1403 = vld [vmem:[#allocation5 + $0x60] sm:$0xff]
    %v1404 = vld [vmem:[#allocation5 + $0x68] sm:$0xff]
    %v1405 = vld [vmem:[#allocation5 + $0x70] sm:$0xff]
    %v1406 = vld [vmem:[#allocation5 + $0x78] sm:$0xff]
    %v1407 = vld [vmem:[%s7] sm:$0x3]
    %v1409 = vperm.slane %v1407, 0
    %v1410 = vperm.slane %v1407, 1
    %v1429 = vunpack.c.l.b16 %v1391
    %v1430 = vunpack.c.h.b16 %v1391
    %v1431 = vunpack.c.l.b16 %v1392
    %v1432 = vunpack.c.h.b16 %v1392
    %v1433 = vunpack.c.l.b16 %v1393
    %v1434 = vunpack.c.h.b16 %v1393
    %v1435 = vunpack.c.l.b16 %v1394
    %v1436 = vunpack.c.h.b16 %v1394
    %v1437 = vunpack.c.l.b16 %v1395
    %v1438 = vunpack.c.h.b16 %v1395
    %v1439 = vunpack.c.l.b16 %v1396
    %v1440 = vunpack.c.h.b16 %v1396
    %v1441 = vunpack.c.l.b16 %v1397
    %v1442 = vunpack.c.h.b16 %v1397
    %v1443 = vunpack.c.l.b16 %v1398
    %v1444 = vunpack.c.h.b16 %v1398
    %v1445 = vunpack.c.l.b16 %v1399
    %v1446 = vunpack.c.h.b16 %v1399
    %v1447 = vunpack.c.l.b16 %v1400
    %v1448 = vunpack.c.h.b16 %v1400
    %v1449 = vunpack.c.l.b16 %v1401
    %v1450 = vunpack.c.h.b16 %v1401
    %v1451 = vunpack.c.l.b16 %v1402
    %v1452 = vunpack.c.h.b16 %v1402
    %v1453 = vunpack.c.l.b16 %v1403
    %v1454 = vunpack.c.h.b16 %v1403
    %v1455 = vunpack.c.l.b16 %v1404
    %v1456 = vunpack.c.h.b16 %v1404
    %v1457 = vunpack.c.l.b16 %v1405
    %v1458 = vunpack.c.h.b16 %v1405
    %v1459 = vunpack.c.l.b16 %v1406
    %v1460 = vunpack.c.h.b16 %v1406
    %v1461 = vpack.c.b16 %v1431, %v1429
    %v1462 = vpack.c.b16 %v1432, %v1430
    %v1463 = vpack.c.b16 %v1435, %v1433
    %v1464 = vpack.c.b16 %v1436, %v1434
    %v1465 = vpack.c.b16 %v1439, %v1437
    %v1466 = vpack.c.b16 %v1440, %v1438
    %v1467 = vpack.c.b16 %v1443, %v1441
    %v1468 = vpack.c.b16 %v1444, %v1442
    %v1469 = vpack.c.b16 %v1447, %v1445
    %v1470 = vpack.c.b16 %v1448, %v1446
    %v1471 = vpack.c.b16 %v1451, %v1449
    %v1472 = vpack.c.b16 %v1452, %v1450
    %v1473 = vpack.c.b16 %v1455, %v1453
    %v1474 = vpack.c.b16 %v1456, %v1454
    %v1475 = vpack.c.b16 %v1459, %v1457
    %v1476 = vpack.c.b16 %v1460, %v1458
    %1493 = vmatpush.bf16.msra.mxu0 %v1475
    %1494 = vmatpush.bf16.msra.mxu0 %v1473
    %1495 = vmatpush.bf16.msra.mxu0 %v1471
    %1496 = vmatpush.bf16.msra.mxu0 %v1469
    %1497 = vmatpush.bf16.msra.mxu0 %v1467
    %1498 = vmatpush.bf16.msra.mxu0 %v1465
    %1499 = vmatpush.bf16.msra.mxu0 %v1463
    %1500 = vmatpush.bf16.msra.mxu0 %v1461
    %1501 = vmatmul.bf16.gmra.mxu0 %v1390
    %v1502 = vpop.f32.mrf.mxu0
    %v1503 = vadd.f32 %v1409, %v1502
    %v1504 = vpop.f32.mrf.mxu0
    %v1505 = vadd.f32 %v1409, %v1504
    %1506 = vdwg.mxu0
    %1507 = vmatpush.bf16.msra.mxu0 %v1476
    %1508 = vmatpush.bf16.msra.mxu0 %v1474
    %1509 = vmatpush.bf16.msra.mxu0 %v1472
    %1510 = vmatpush.bf16.msra.mxu0 %v1470
    %1511 = vmatpush.bf16.msra.mxu0 %v1468
    %1512 = vmatpush.bf16.msra.mxu0 %v1466
    %1513 = vmatpush.bf16.msra.mxu0 %v1464
    %1514 = vmatpush.bf16.msra.mxu0 %v1462
    %1515 = vmatmul.bf16.gmra.mxu0 %v1390
    %v1516 = vpop.f32.mrf.mxu0
    %v1517 = vadd.f32 %v1410, %v1516
    %v1518 = vpop.f32.mrf.mxu0
    %v1519 = vadd.f32 %v1410, %v1518
    %1520 = vdwg.mxu0
    %v1521 = vmax.f32 %v1503, 0.0
    %v1522 = vmax.f32 %v1517, 0.0
    %v1523 = vmax.f32 %v1505, 0.0
    %v1524 = vmax.f32 %v1519, 0.0
    %v1525 = vpack.c.bf16 %v1523, %v1521
    %v1526 = vpack.c.bf16 %v1524, %v1522
    %v1527 = vld [vmem:[%s8] sm:$0xff]
    %v1528 = vld [vmem:[%s8 + $0x8] sm:$0xff]
    %v1529 = vld [vmem:[%s8 + $0x10] sm:$0xff]
    %v1530 = vld [vmem:[%s8 + $0x18] sm:$0xff]
    %v1531 = vld [vmem:[%s8 + $0x20] sm:$0xff]
    %v1532 = vld [vmem:[%s8 + $0x28] sm:$0xff]
    %v1533 = vld [vmem:[%s8 + $0x30] sm:$0xff]
    %v1534 = vld [vmem:[%s8 + $0x38] sm:$0xff]
    %v1535 = vld [vmem:[%s8 + $0x40] sm:$0xff]
    %v1536 = vld [vmem:[%s8 + $0x48] sm:$0xff]
    %v1537 = vld [vmem:[%s8 + $0x50] sm:$0xff]
    %v1538 = vld [vmem:[%s8 + $0x58] sm:$0xff]
    %v1539 = vld [vmem:[%s8 + $0x60] sm:$0xff]
    %v1540 = vld [vmem:[%s8 + $0x68] sm:$0xff]
    %v1541 = vld [vmem:[%s8 + $0x70] sm:$0xff]
    %v1542 = vld [vmem:[%s8 + $0x78] sm:$0xff]
    %v1543 = vld [vmem:[%s8 + $0x80] sm:$0xff]
    %v1544 = vld [vmem:[%s8 + $0x88] sm:$0xff]
    %v1545 = vld [vmem:[%s8 + $0x90] sm:$0xff]
    %v1546 = vld [vmem:[%s8 + $0x98] sm:$0xff]
    %v1547 = vld [vmem:[%s8 + $0xa0] sm:$0xff]
    %v1548 = vld [vmem:[%s8 + $0xa8] sm:$0xff]
    %v1549 = vld [vmem:[%s8 + $0xb0] sm:$0xff]
    %v1550 = vld [vmem:[%s8 + $0xb8] sm:$0xff]
    %v1551 = vld [vmem:[%s8 + $0xc0] sm:$0xff]
    %v1552 = vld [vmem:[%s8 + $0xc8] sm:$0xff]
    %v1553 = vld [vmem:[%s8 + $0xd0] sm:$0xff]
    %v1554 = vld [vmem:[%s8 + $0xd8] sm:$0xff]
    %v1555 = vld [vmem:[%s8 + $0xe0] sm:$0xff]
    %v1556 = vld [vmem:[%s8 + $0xe8] sm:$0xff]
    %v1557 = vld [vmem:[%s8 + $0xf0] sm:$0xff]
    %v1558 = vld [vmem:[%s8 + $0xf8] sm:$0xff]
    %v1559 = vld [vmem:[%s8 + $0x100] sm:$0xff]
    %v1560 = vld [vmem:[%s8 + $0x108] sm:$0xff]
    %v1561 = vld [vmem:[%s8 + $0x110] sm:$0xff]
    %v1562 = vld [vmem:[%s8 + $0x118] sm:$0xff]
    %v1563 = vld [vmem:[%s8 + $0x120] sm:$0xff]
    %v1564 = vld [vmem:[%s8 + $0x128] sm:$0xff]
    %v1565 = vld [vmem:[%s8 + $0x130] sm:$0xff]
    %v1566 = vld [vmem:[%s8 + $0x138] sm:$0xff]
    %v1567 = vld [vmem:[%s8 + $0x140] sm:$0xff]
    %v1568 = vld [vmem:[%s8 + $0x148] sm:$0xff]
    %v1569 = vld [vmem:[%s8 + $0x150] sm:$0xff]
    %v1570 = vld [vmem:[%s8 + $0x158] sm:$0xff]
    %v1571 = vld [vmem:[%s8 + $0x160] sm:$0xff]
    %v1572 = vld [vmem:[%s8 + $0x168] sm:$0xff]
    %v1573 = vld [vmem:[%s8 + $0x170] sm:$0xff]
    %v1574 = vld [vmem:[%s8 + $0x178] sm:$0xff]
    %v1575 = vld [vmem:[%s8 + $0x180] sm:$0xff]
    %v1576 = vld [vmem:[%s8 + $0x188] sm:$0xff]
    %v1577 = vld [vmem:[%s8 + $0x190] sm:$0xff]
    %v1578 = vld [vmem:[%s8 + $0x198] sm:$0xff]
    %v1579 = vld [vmem:[%s8 + $0x1a0] sm:$0xff]
    %v1580 = vld [vmem:[%s8 + $0x1a8] sm:$0xff]
    %v1581 = vld [vmem:[%s8 + $0x1b0] sm:$0xff]
    %v1582 = vld [vmem:[%s8 + $0x1b8] sm:$0xff]
    %v1583 = vld [vmem:[%s8 + $0x1c0] sm:$0xff]
    %v1584 = vld [vmem:[%s8 + $0x1c8] sm:$0xff]
    %v1585 = vld [vmem:[%s8 + $0x1d0] sm:$0xff]
    %v1586 = vld [vmem:[%s8 + $0x1d8] sm:$0xff]
    %v1587 = vld [vmem:[%s8 + $0x1e0] sm:$0xff]
    %v1588 = vld [vmem:[%s8 + $0x1e8] sm:$0xff]
    %v1589 = vld [vmem:[%s8 + $0x1f0] sm:$0xff]
    %v1590 = vld [vmem:[%s8 + $0x1f8] sm:$0xff]
    %v1591 = vld [vmem:[%s8 + $0x200] sm:$0xff]
    %v1592 = vld [vmem:[%s8 + $0x208] sm:$0xff]
    %v1593 = vld [vmem:[%s8 + $0x210] sm:$0xff]
    %v1594 = vld [vmem:[%s8 + $0x218] sm:$0xff]
    %v1595 = vld [vmem:[%s8 + $0x220] sm:$0xff]
    %v1596 = vld [vmem:[%s8 + $0x228] sm:$0xff]
    %v1597 = vld [vmem:[%s8 + $0x230] sm:$0xff]
    %v1598 = vld [vmem:[%s8 + $0x238] sm:$0xff]
    %v1599 = vld [vmem:[%s8 + $0x240] sm:$0xff]
    %v1600 = vld [vmem:[%s8 + $0x248] sm:$0xff]
    %v1601 = vld [vmem:[%s8 + $0x250] sm:$0xff]
    %v1602 = vld [vmem:[%s8 + $0x258] sm:$0xff]
    %v1603 = vld [vmem:[%s8 + $0x260] sm:$0xff]
    %v1604 = vld [vmem:[%s8 + $0x268] sm:$0xff]
    %v1605 = vld [vmem:[%s8 + $0x270] sm:$0xff]
    %v1606 = vld [vmem:[%s8 + $0x278] sm:$0xff]
    %v1607 = vld [vmem:[%s8 + $0x280] sm:$0xff]
    %v1608 = vld [vmem:[%s8 + $0x288] sm:$0xff]
    %v1609 = vld [vmem:[%s8 + $0x290] sm:$0xff]
    %v1610 = vld [vmem:[%s8 + $0x298] sm:$0xff]
    %v1611 = vld [vmem:[%s8 + $0x2a0] sm:$0xff]
    %v1612 = vld [vmem:[%s8 + $0x2a8] sm:$0xff]
    %v1613 = vld [vmem:[%s8 + $0x2b0] sm:$0xff]
    %v1614 = vld [vmem:[%s8 + $0x2b8] sm:$0xff]
    %v1615 = vld [vmem:[%s8 + $0x2c0] sm:$0xff]
    %v1616 = vld [vmem:[%s8 + $0x2c8] sm:$0xff]
    %v1617 = vld [vmem:[%s8 + $0x2d0] sm:$0xff]
    %v1618 = vld [vmem:[%s8 + $0x2d8] sm:$0xff]
    %v1619 = vld [vmem:[%s8 + $0x2e0] sm:$0xff]
    %v1620 = vld [vmem:[%s8 + $0x2e8] sm:$0xff]
    %v1621 = vld [vmem:[%s8 + $0x2f0] sm:$0xff]
    %v1622 = vld [vmem:[%s8 + $0x2f8] sm:$0xff]
    %v1623 = vld [vmem:[%s8 + $0x300] sm:$0xff]
    %v1624 = vld [vmem:[%s8 + $0x308] sm:$0xff]
    %v1625 = vld [vmem:[%s8 + $0x310] sm:$0xff]
    %v1626 = vld [vmem:[%s8 + $0x318] sm:$0xff]
    %v1627 = vld [vmem:[%s8 + $0x320] sm:$0xff]
    %v1628 = vld [vmem:[%s8 + $0x328] sm:$0xff]
    %v1629 = vld [vmem:[%s8 + $0x330] sm:$0xff]
    %v1630 = vld [vmem:[%s8 + $0x338] sm:$0xff]
    %v1631 = vld [vmem:[%s8 + $0x340] sm:$0xff]
    %v1632 = vld [vmem:[%s8 + $0x348] sm:$0xff]
    %v1633 = vld [vmem:[%s8 + $0x350] sm:$0xff]
    %v1634 = vld [vmem:[%s8 + $0x358] sm:$0xff]
    %v1635 = vld [vmem:[%s8 + $0x360] sm:$0xff]
    %v1636 = vld [vmem:[%s8 + $0x368] sm:$0xff]
    %v1637 = vld [vmem:[%s8 + $0x370] sm:$0xff]
    %v1638 = vld [vmem:[%s8 + $0x378] sm:$0xff]
    %v1639 = vld [vmem:[%s8 + $0x380] sm:$0xff]
    %v1640 = vld [vmem:[%s8 + $0x388] sm:$0xff]
    %v1641 = vld [vmem:[%s8 + $0x390] sm:$0xff]
    %v1642 = vld [vmem:[%s8 + $0x398] sm:$0xff]
    %v1643 = vld [vmem:[%s8 + $0x3a0] sm:$0xff]
    %v1644 = vld [vmem:[%s8 + $0x3a8] sm:$0xff]
    %v1645 = vld [vmem:[%s8 + $0x3b0] sm:$0xff]
    %v1646 = vld [vmem:[%s8 + $0x3b8] sm:$0xff]
    %v1647 = vld [vmem:[%s8 + $0x3c0] sm:$0xff]
    %v1648 = vld [vmem:[%s8 + $0x3c8] sm:$0xff]
    %v1649 = vld [vmem:[%s8 + $0x3d0] sm:$0xff]
    %v1650 = vld [vmem:[%s8 + $0x3d8] sm:$0xff]
    %v1651 = vld [vmem:[%s8 + $0x3e0] sm:$0xff]
    %v1652 = vld [vmem:[%s8 + $0x3e8] sm:$0xff]
    %v1653 = vld [vmem:[%s8 + $0x3f0] sm:$0xff]
    %v1654 = vld [vmem:[%s8 + $0x3f8] sm:$0xff]
    %v1655 = vld [vmem:[%s9] sm:$0xff]
    %v1657 = vperm.slane %v1655, 0
    %v1658 = vperm.slane %v1655, 1
    %v1659 = vperm.slane %v1655, 2
    %v1660 = vperm.slane %v1655, 3
    %v1661 = vperm.slane %v1655, 4
    %v1662 = vperm.slane %v1655, 5
    %v1663 = vperm.slane %v1655, 6
    %v1664 = vperm.slane %v1655, 7
    %v1801 = vunpack.c.l.b16 %v1527
    %v1802 = vunpack.c.h.b16 %v1527
    %v1803 = vunpack.c.l.b16 %v1528
    %v1804 = vunpack.c.h.b16 %v1528
    %v1805 = vunpack.c.l.b16 %v1529
    %v1806 = vunpack.c.h.b16 %v1529
    %v1807 = vunpack.c.l.b16 %v1530
    %v1808 = vunpack.c.h.b16 %v1530
    %v1809 = vunpack.c.l.b16 %v1531
    %v1810 = vunpack.c.h.b16 %v1531
    %v1811 = vunpack.c.l.b16 %v1532
    %v1812 = vunpack.c.h.b16 %v1532
    %v1813 = vunpack.c.l.b16 %v1533
    %v1814 = vunpack.c.h.b16 %v1533
    %v1815 = vunpack.c.l.b16 %v1534
    %v1816 = vunpack.c.h.b16 %v1534
    %v1817 = vunpack.c.l.b16 %v1535
    %v1818 = vunpack.c.h.b16 %v1535
    %v1819 = vunpack.c.l.b16 %v1536
    %v1820 = vunpack.c.h.b16 %v1536
    %v1821 = vunpack.c.l.b16 %v1537
    %v1822 = vunpack.c.h.b16 %v1537
    %v1823 = vunpack.c.l.b16 %v1538
    %v1824 = vunpack.c.h.b16 %v1538
    %v1825 = vunpack.c.l.b16 %v1539
    %v1826 = vunpack.c.h.b16 %v1539
    %v1827 = vunpack.c.l.b16 %v1540
    %v1828 = vunpack.c.h.b16 %v1540
    %v1829 = vunpack.c.l.b16 %v1541
    %v1830 = vunpack.c.h.b16 %v1541
    %v1831 = vunpack.c.l.b16 %v1542
    %v1832 = vunpack.c.h.b16 %v1542
    %v1833 = vunpack.c.l.b16 %v1543
    %v1834 = vunpack.c.h.b16 %v1543
    %v1835 = vunpack.c.l.b16 %v1544
    %v1836 = vunpack.c.h.b16 %v1544
    %v1837 = vunpack.c.l.b16 %v1545
    %v1838 = vunpack.c.h.b16 %v1545
    %v1839 = vunpack.c.l.b16 %v1546
    %v1840 = vunpack.c.h.b16 %v1546
    %v1841 = vunpack.c.l.b16 %v1547
    %v1842 = vunpack.c.h.b16 %v1547
    %v1843 = vunpack.c.l.b16 %v1548
    %v1844 = vunpack.c.h.b16 %v1548
    %v1845 = vunpack.c.l.b16 %v1549
    %v1846 = vunpack.c.h.b16 %v1549
    %v1847 = vunpack.c.l.b16 %v1550
    %v1848 = vunpack.c.h.b16 %v1550
    %v1849 = vunpack.c.l.b16 %v1551
    %v1850 = vunpack.c.h.b16 %v1551
    %v1851 = vunpack.c.l.b16 %v1552
    %v1852 = vunpack.c.h.b16 %v1552
    %v1853 = vunpack.c.l.b16 %v1553
    %v1854 = vunpack.c.h.b16 %v1553
    %v1855 = vunpack.c.l.b16 %v1554
    %v1856 = vunpack.c.h.b16 %v1554
    %v1857 = vunpack.c.l.b16 %v1555
    %v1858 = vunpack.c.h.b16 %v1555
    %v1859 = vunpack.c.l.b16 %v1556
    %v1860 = vunpack.c.h.b16 %v1556
    %v1861 = vunpack.c.l.b16 %v1557
    %v1862 = vunpack.c.h.b16 %v1557
    %v1863 = vunpack.c.l.b16 %v1558
    %v1864 = vunpack.c.h.b16 %v1558
    %v1865 = vunpack.c.l.b16 %v1559
    %v1866 = vunpack.c.h.b16 %v1559
    %v1867 = vunpack.c.l.b16 %v1560
    %v1868 = vunpack.c.h.b16 %v1560
    %v1869 = vunpack.c.l.b16 %v1561
    %v1870 = vunpack.c.h.b16 %v1561
    %v1871 = vunpack.c.l.b16 %v1562
    %v1872 = vunpack.c.h.b16 %v1562
    %v1873 = vunpack.c.l.b16 %v1563
    %v1874 = vunpack.c.h.b16 %v1563
    %v1875 = vunpack.c.l.b16 %v1564
    %v1876 = vunpack.c.h.b16 %v1564
    %v1877 = vunpack.c.l.b16 %v1565
    %v1878 = vunpack.c.h.b16 %v1565
    %v1879 = vunpack.c.l.b16 %v1566
    %v1880 = vunpack.c.h.b16 %v1566
    %v1881 = vunpack.c.l.b16 %v1567
    %v1882 = vunpack.c.h.b16 %v1567
    %v1883 = vunpack.c.l.b16 %v1568
    %v1884 = vunpack.c.h.b16 %v1568
    %v1885 = vunpack.c.l.b16 %v1569
    %v1886 = vunpack.c.h.b16 %v1569
    %v1887 = vunpack.c.l.b16 %v1570
    %v1888 = vunpack.c.h.b16 %v1570
    %v1889 = vunpack.c.l.b16 %v1571
    %v1890 = vunpack.c.h.b16 %v1571
    %v1891 = vunpack.c.l.b16 %v1572
    %v1892 = vunpack.c.h.b16 %v1572
    %v1893 = vunpack.c.l.b16 %v1573
    %v1894 = vunpack.c.h.b16 %v1573
    %v1895 = vunpack.c.l.b16 %v1574
    %v1896 = vunpack.c.h.b16 %v1574
    %v1897 = vunpack.c.l.b16 %v1575
    %v1898 = vunpack.c.h.b16 %v1575
    %v1899 = vunpack.c.l.b16 %v1576
    %v1900 = vunpack.c.h.b16 %v1576
    %v1901 = vunpack.c.l.b16 %v1577
    %v1902 = vunpack.c.h.b16 %v1577
    %v1903 = vunpack.c.l.b16 %v1578
    %v1904 = vunpack.c.h.b16 %v1578
    %v1905 = vunpack.c.l.b16 %v1579
    %v1906 = vunpack.c.h.b16 %v1579
    %v1907 = vunpack.c.l.b16 %v1580
    %v1908 = vunpack.c.h.b16 %v1580
    %v1909 = vunpack.c.l.b16 %v1581
    %v1910 = vunpack.c.h.b16 %v1581
    %v1911 = vunpack.c.l.b16 %v1582
    %v1912 = vunpack.c.h.b16 %v1582
    %v1913 = vunpack.c.l.b16 %v1583
    %v1914 = vunpack.c.h.b16 %v1583
    %v1915 = vunpack.c.l.b16 %v1584
    %v1916 = vunpack.c.h.b16 %v1584
    %v1917 = vunpack.c.l.b16 %v1585
    %v1918 = vunpack.c.h.b16 %v1585
    %v1919 = vunpack.c.l.b16 %v1586
    %v1920 = vunpack.c.h.b16 %v1586
    %v1921 = vunpack.c.l.b16 %v1587
    %v1922 = vunpack.c.h.b16 %v1587
    %v1923 = vunpack.c.l.b16 %v1588
    %v1924 = vunpack.c.h.b16 %v1588
    %v1925 = vunpack.c.l.b16 %v1589
    %v1926 = vunpack.c.h.b16 %v1589
    %v1927 = vunpack.c.l.b16 %v1590
    %v1928 = vunpack.c.h.b16 %v1590
    %v1929 = vunpack.c.l.b16 %v1591
    %v1930 = vunpack.c.h.b16 %v1591
    %v1931 = vunpack.c.l.b16 %v1592
    %v1932 = vunpack.c.h.b16 %v1592
    %v1933 = vunpack.c.l.b16 %v1593
    %v1934 = vunpack.c.h.b16 %v1593
    %v1935 = vunpack.c.l.b16 %v1594
    %v1936 = vunpack.c.h.b16 %v1594
    %v1937 = vunpack.c.l.b16 %v1595
    %v1938 = vunpack.c.h.b16 %v1595
    %v1939 = vunpack.c.l.b16 %v1596
    %v1940 = vunpack.c.h.b16 %v1596
    %v1941 = vunpack.c.l.b16 %v1597
    %v1942 = vunpack.c.h.b16 %v1597
    %v1943 = vunpack.c.l.b16 %v1598
    %v1944 = vunpack.c.h.b16 %v1598
    %v1945 = vunpack.c.l.b16 %v1599
    %v1946 = vunpack.c.h.b16 %v1599
    %v1947 = vunpack.c.l.b16 %v1600
    %v1948 = vunpack.c.h.b16 %v1600
    %v1949 = vunpack.c.l.b16 %v1601
    %v1950 = vunpack.c.h.b16 %v1601
    %v1951 = vunpack.c.l.b16 %v1602
    %v1952 = vunpack.c.h.b16 %v1602
    %v1953 = vunpack.c.l.b16 %v1603
    %v1954 = vunpack.c.h.b16 %v1603
    %v1955 = vunpack.c.l.b16 %v1604
    %v1956 = vunpack.c.h.b16 %v1604
    %v1957 = vunpack.c.l.b16 %v1605
    %v1958 = vunpack.c.h.b16 %v1605
    %v1959 = vunpack.c.l.b16 %v1606
    %v1960 = vunpack.c.h.b16 %v1606
    %v1961 = vunpack.c.l.b16 %v1607
    %v1962 = vunpack.c.h.b16 %v1607
    %v1963 = vunpack.c.l.b16 %v1608
    %v1964 = vunpack.c.h.b16 %v1608
    %v1965 = vunpack.c.l.b16 %v1609
    %v1966 = vunpack.c.h.b16 %v1609
    %v1967 = vunpack.c.l.b16 %v1610
    %v1968 = vunpack.c.h.b16 %v1610
    %v1969 = vunpack.c.l.b16 %v1611
    %v1970 = vunpack.c.h.b16 %v1611
    %v1971 = vunpack.c.l.b16 %v1612
    %v1972 = vunpack.c.h.b16 %v1612
    %v1973 = vunpack.c.l.b16 %v1613
    %v1974 = vunpack.c.h.b16 %v1613
    %v1975 = vunpack.c.l.b16 %v1614
    %v1976 = vunpack.c.h.b16 %v1614
    %v1977 = vunpack.c.l.b16 %v1615
    %v1978 = vunpack.c.h.b16 %v1615
    %v1979 = vunpack.c.l.b16 %v1616
    %v1980 = vunpack.c.h.b16 %v1616
    %v1981 = vunpack.c.l.b16 %v1617
    %v1982 = vunpack.c.h.b16 %v1617
    %v1983 = vunpack.c.l.b16 %v1618
    %v1984 = vunpack.c.h.b16 %v1618
    %v1985 = vunpack.c.l.b16 %v1619
    %v1986 = vunpack.c.h.b16 %v1619
    %v1987 = vunpack.c.l.b16 %v1620
    %v1988 = vunpack.c.h.b16 %v1620
    %v1989 = vunpack.c.l.b16 %v1621
    %v1990 = vunpack.c.h.b16 %v1621
    %v1991 = vunpack.c.l.b16 %v1622
    %v1992 = vunpack.c.h.b16 %v1622
    %v1993 = vunpack.c.l.b16 %v1623
    %v1994 = vunpack.c.h.b16 %v1623
    %v1995 = vunpack.c.l.b16 %v1624
    %v1996 = vunpack.c.h.b16 %v1624
    %v1997 = vunpack.c.l.b16 %v1625
    %v1998 = vunpack.c.h.b16 %v1625
    %v1999 = vunpack.c.l.b16 %v1626
    %v2000 = vunpack.c.h.b16 %v1626
    %v2001 = vunpack.c.l.b16 %v1627
    %v2002 = vunpack.c.h.b16 %v1627
    %v2003 = vunpack.c.l.b16 %v1628
    %v2004 = vunpack.c.h.b16 %v1628
    %v2005 = vunpack.c.l.b16 %v1629
    %v2006 = vunpack.c.h.b16 %v1629
    %v2007 = vunpack.c.l.b16 %v1630
    %v2008 = vunpack.c.h.b16 %v1630
    %v2009 = vunpack.c.l.b16 %v1631
    %v2010 = vunpack.c.h.b16 %v1631
    %v2011 = vunpack.c.l.b16 %v1632
    %v2012 = vunpack.c.h.b16 %v1632
    %v2013 = vunpack.c.l.b16 %v1633
    %v2014 = vunpack.c.h.b16 %v1633
    %v2015 = vunpack.c.l.b16 %v1634
    %v2016 = vunpack.c.h.b16 %v1634
    %v2017 = vunpack.c.l.b16 %v1635
    %v2018 = vunpack.c.h.b16 %v1635
    %v2019 = vunpack.c.l.b16 %v1636
    %v2020 = vunpack.c.h.b16 %v1636
    %v2021 = vunpack.c.l.b16 %v1637
    %v2022 = vunpack.c.h.b16 %v1637
    %v2023 = vunpack.c.l.b16 %v1638
    %v2024 = vunpack.c.h.b16 %v1638
    %v2025 = vunpack.c.l.b16 %v1639
    %v2026 = vunpack.c.h.b16 %v1639
    %v2027 = vunpack.c.l.b16 %v1640
    %v2028 = vunpack.c.h.b16 %v1640
    %v2029 = vunpack.c.l.b16 %v1641
    %v2030 = vunpack.c.h.b16 %v1641
    %v2031 = vunpack.c.l.b16 %v1642
    %v2032 = vunpack.c.h.b16 %v1642
    %v2033 = vunpack.c.l.b16 %v1643
    %v2034 = vunpack.c.h.b16 %v1643
    %v2035 = vunpack.c.l.b16 %v1644
    %v2036 = vunpack.c.h.b16 %v1644
    %v2037 = vunpack.c.l.b16 %v1645
    %v2038 = vunpack.c.h.b16 %v1645
    %v2039 = vunpack.c.l.b16 %v1646
    %v2040 = vunpack.c.h.b16 %v1646
    %v2041 = vunpack.c.l.b16 %v1647
    %v2042 = vunpack.c.h.b16 %v1647
    %v2043 = vunpack.c.l.b16 %v1648
    %v2044 = vunpack.c.h.b16 %v1648
    %v2045 = vunpack.c.l.b16 %v1649
    %v2046 = vunpack.c.h.b16 %v1649
    %v2047 = vunpack.c.l.b16 %v1650
    %v2048 = vunpack.c.h.b16 %v1650
    %v2049 = vunpack.c.l.b16 %v1651
    %v2050 = vunpack.c.h.b16 %v1651
    %v2051 = vunpack.c.l.b16 %v1652
    %v2052 = vunpack.c.h.b16 %v1652
    %v2053 = vunpack.c.l.b16 %v1653
    %v2054 = vunpack.c.h.b16 %v1653
    %v2055 = vunpack.c.l.b16 %v1654
    %v2056 = vunpack.c.h.b16 %v1654
    %v2057 = vpack.c.b16 %v1809, %v1801
    %v2058 = vpack.c.b16 %v1810, %v1802
    %v2059 = vpack.c.b16 %v1811, %v1803
    %v2060 = vpack.c.b16 %v1812, %v1804
    %v2061 = vpack.c.b16 %v1813, %v1805
    %v2062 = vpack.c.b16 %v1814, %v1806
    %v2063 = vpack.c.b16 %v1815, %v1807
    %v2064 = vpack.c.b16 %v1816, %v1808
    %v2065 = vpack.c.b16 %v1825, %v1817
    %v2066 = vpack.c.b16 %v1826, %v1818
    %v2067 = vpack.c.b16 %v1827, %v1819
    %v2068 = vpack.c.b16 %v1828, %v1820
    %v2069 = vpack.c.b16 %v1829, %v1821
    %v2070 = vpack.c.b16 %v1830, %v1822
    %v2071 = vpack.c.b16 %v1831, %v1823
    %v2072 = vpack.c.b16 %v1832, %v1824
    %v2073 = vpack.c.b16 %v1841, %v1833
    %v2074 = vpack.c.b16 %v1842, %v1834
    %v2075 = vpack.c.b16 %v1843, %v1835
    %v2076 = vpack.c.b16 %v1844, %v1836
    %v2077 = vpack.c.b16 %v1845, %v1837
    %v2078 = vpack.c.b16 %v1846, %v1838
    %v2079 = vpack.c.b16 %v1847, %v1839
    %v2080 = vpack.c.b16 %v1848, %v1840
    %v2081 = vpack.c.b16 %v1857, %v1849
    %v2082 = vpack.c.b16 %v1858, %v1850
    %v2083 = vpack.c.b16 %v1859, %v1851
    %v2084 = vpack.c.b16 %v1860, %v1852
    %v2085 = vpack.c.b16 %v1861, %v1853
    %v2086 = vpack.c.b16 %v1862, %v1854
    %v2087 = vpack.c.b16 %v1863, %v1855
    %v2088 = vpack.c.b16 %v1864, %v1856
    %v2089 = vpack.c.b16 %v1873, %v1865
    %v2090 = vpack.c.b16 %v1874, %v1866
    %v2091 = vpack.c.b16 %v1875, %v1867
    %v2092 = vpack.c.b16 %v1876, %v1868
    %v2093 = vpack.c.b16 %v1877, %v1869
    %v2094 = vpack.c.b16 %v1878, %v1870
    %v2095 = vpack.c.b16 %v1879, %v1871
    %v2096 = vpack.c.b16 %v1880, %v1872
    %v2097 = vpack.c.b16 %v1889, %v1881
    %v2098 = vpack.c.b16 %v1890, %v1882
    %v2099 = vpack.c.b16 %v1891, %v1883
    %v2100 = vpack.c.b16 %v1892, %v1884
    %v2101 = vpack.c.b16 %v1893, %v1885
    %v2102 = vpack.c.b16 %v1894, %v1886
    %v2103 = vpack.c.b16 %v1895, %v1887
    %v2104 = vpack.c.b16 %v1896, %v1888
    %v2105 = vpack.c.b16 %v1905, %v1897
    %v2106 = vpack.c.b16 %v1906, %v1898
    %v2107 = vpack.c.b16 %v1907, %v1899
    %v2108 = vpack.c.b16 %v1908, %v1900
    %v2109 = vpack.c.b16 %v1909, %v1901
    %v2110 = vpack.c.b16 %v1910, %v1902
    %v2111 = vpack.c.b16 %v1911, %v1903
    %v2112 = vpack.c.b16 %v1912, %v1904
    %v2113 = vpack.c.b16 %v1921, %v1913
    %v2114 = vpack.c.b16 %v1922, %v1914
    %v2115 = vpack.c.b16 %v1923, %v1915
    %v2116 = vpack.c.b16 %v1924, %v1916
    %v2117 = vpack.c.b16 %v1925, %v1917
    %v2118 = vpack.c.b16 %v1926, %v1918
    %v2119 = vpack.c.b16 %v1927, %v1919
    %v2120 = vpack.c.b16 %v1928, %v1920
    %v2121 = vpack.c.b16 %v1937, %v1929
    %v2122 = vpack.c.b16 %v1938, %v1930
    %v2123 = vpack.c.b16 %v1939, %v1931
    %v2124 = vpack.c.b16 %v1940, %v1932
    %v2125 = vpack.c.b16 %v1941, %v1933
    %v2126 = vpack.c.b16 %v1942, %v1934
    %v2127 = vpack.c.b16 %v1943, %v1935
    %v2128 = vpack.c.b16 %v1944, %v1936
    %v2129 = vpack.c.b16 %v1953, %v1945
    %v2130 = vpack.c.b16 %v1954, %v1946
    %v2131 = vpack.c.b16 %v1955, %v1947
    %v2132 = vpack.c.b16 %v1956, %v1948
    %v2133 = vpack.c.b16 %v1957, %v1949
    %v2134 = vpack.c.b16 %v1958, %v1950
    %v2135 = vpack.c.b16 %v1959, %v1951
    %v2136 = vpack.c.b16 %v1960, %v1952
    %v2137 = vpack.c.b16 %v1969, %v1961
    %v2138 = vpack.c.b16 %v1970, %v1962
    %v2139 = vpack.c.b16 %v1971, %v1963
    %v2140 = vpack.c.b16 %v1972, %v1964
    %v2141 = vpack.c.b16 %v1973, %v1965
    %v2142 = vpack.c.b16 %v1974, %v1966
    %v2143 = vpack.c.b16 %v1975, %v1967
    %v2144 = vpack.c.b16 %v1976, %v1968
    %v2145 = vpack.c.b16 %v1985, %v1977
    %v2146 = vpack.c.b16 %v1986, %v1978
    %v2147 = vpack.c.b16 %v1987, %v1979
    %v2148 = vpack.c.b16 %v1988, %v1980
    %v2149 = vpack.c.b16 %v1989, %v1981
    %v2150 = vpack.c.b16 %v1990, %v1982
    %v2151 = vpack.c.b16 %v1991, %v1983
    %v2152 = vpack.c.b16 %v1992, %v1984
    %v2153 = vpack.c.b16 %v2001, %v1993
    %v2154 = vpack.c.b16 %v2002, %v1994
    %v2155 = vpack.c.b16 %v2003, %v1995
    %v2156 = vpack.c.b16 %v2004, %v1996
    %v2157 = vpack.c.b16 %v2005, %v1997
    %v2158 = vpack.c.b16 %v2006, %v1998
    %v2159 = vpack.c.b16 %v2007, %v1999
    %v2160 = vpack.c.b16 %v2008, %v2000
    %v2161 = vpack.c.b16 %v2017, %v2009
    %v2162 = vpack.c.b16 %v2018, %v2010
    %v2163 = vpack.c.b16 %v2019, %v2011
    %v2164 = vpack.c.b16 %v2020, %v2012
    %v2165 = vpack.c.b16 %v2021, %v2013
    %v2166 = vpack.c.b16 %v2022, %v2014
    %v2167 = vpack.c.b16 %v2023, %v2015
    %v2168 = vpack.c.b16 %v2024, %v2016
    %v2169 = vpack.c.b16 %v2033, %v2025
    %v2170 = vpack.c.b16 %v2034, %v2026
    %v2171 = vpack.c.b16 %v2035, %v2027
    %v2172 = vpack.c.b16 %v2036, %v2028
    %v2173 = vpack.c.b16 %v2037, %v2029
    %v2174 = vpack.c.b16 %v2038, %v2030
    %v2175 = vpack.c.b16 %v2039, %v2031
    %v2176 = vpack.c.b16 %v2040, %v2032
    %v2177 = vpack.c.b16 %v2049, %v2041
    %v2178 = vpack.c.b16 %v2050, %v2042
    %v2179 = vpack.c.b16 %v2051, %v2043
    %v2180 = vpack.c.b16 %v2052, %v2044
    %v2181 = vpack.c.b16 %v2053, %v2045
    %v2182 = vpack.c.b16 %v2054, %v2046
    %v2183 = vpack.c.b16 %v2055, %v2047
    %v2184 = vpack.c.b16 %v2056, %v2048
    %2313 = vmatpush.bf16.msra.mxu0 %v2113
    %2314 = vmatpush.bf16.msra.mxu0 %v2105
    %2315 = vmatpush.bf16.msra.mxu0 %v2097
    %2316 = vmatpush.bf16.msra.mxu0 %v2089
    %2317 = vmatpush.bf16.msra.mxu0 %v2081
    %2318 = vmatpush.bf16.msra.mxu0 %v2073
    %2319 = vmatpush.bf16.msra.mxu0 %v2065
    %2320 = vmatpush.bf16.msra.mxu0 %v2057
    %2321 = vmatmul.bf16.gmra.mxu0 %v1525
    %v2322 = vpop.f32.mrf.mxu0
    %v2323 = vadd.f32 %v1657, %v2322
    %v2324 = vpop.f32.mrf.mxu0
    %v2325 = vadd.f32 %v1657, %v2324
    %2326 = vdwg.mxu0
    %2327 = vmatpush.bf16.msra.mxu0 %v2177
    %2328 = vmatpush.bf16.msra.mxu0 %v2169
    %2329 = vmatpush.bf16.msra.mxu0 %v2161
    %2330 = vmatpush.bf16.msra.mxu0 %v2153
    %2331 = vmatpush.bf16.msra.mxu0 %v2145
    %2332 = vmatpush.bf16.msra.mxu0 %v2137
    %2333 = vmatpush.bf16.msra.mxu0 %v2129
    %2334 = vmatpush.bf16.msra.mxu0 %v2121
    %2335 = vmatmul.bf16.gmra.mxu0 %v1526
    %v2336 = vpop.f32.mrf.mxu0
    %v2337 = vadd.f32 %v2323, %v2336
    %v2338 = vpop.f32.mrf.mxu0
    %v2339 = vadd.f32 %v2325, %v2338
    %2340 = vdwg.mxu0
    %2341 = vmatpush.bf16.msra.mxu0 %v2114
    %2342 = vmatpush.bf16.msra.mxu0 %v2106
    %2343 = vmatpush.bf16.msra.mxu0 %v2098
    %2344 = vmatpush.bf16.msra.mxu0 %v2090
    %2345 = vmatpush.bf16.msra.mxu0 %v2082
    %2346 = vmatpush.bf16.msra.mxu0 %v2074
    %2347 = vmatpush.bf16.msra.mxu0 %v2066
    %2348 = vmatpush.bf16.msra.mxu0 %v2058
    %2349 = vmatmul.bf16.gmra.mxu0 %v1525
    %v2350 = vpop.f32.mrf.mxu0
    %v2351 = vadd.f32 %v1658, %v2350
    %v2352 = vpop.f32.mrf.mxu0
    %v2353 = vadd.f32 %v1658, %v2352
    %2354 = vdwg.mxu0
    %2355 = vmatpush.bf16.msra.mxu0 %v2178
    %2356 = vmatpush.bf16.msra.mxu0 %v2170
    %2357 = vmatpush.bf16.msra.mxu0 %v2162
    %2358 = vmatpush.bf16.msra.mxu0 %v2154
    %2359 = vmatpush.bf16.msra.mxu0 %v2146
    %2360 = vmatpush.bf16.msra.mxu0 %v2138
    %2361 = vmatpush.bf16.msra.mxu0 %v2130
    %2362 = vmatpush.bf16.msra.mxu0 %v2122
    %2363 = vmatmul.bf16.gmra.mxu0 %v1526
    %v2364 = vpop.f32.mrf.mxu0
    %v2365 = vadd.f32 %v2351, %v2364
    %v2366 = vpop.f32.mrf.mxu0
    %v2367 = vadd.f32 %v2353, %v2366
    %2368 = vdwg.mxu0
    %2369 = vmatpush.bf16.msra.mxu0 %v2115
    %2370 = vmatpush.bf16.msra.mxu0 %v2107
    %2371 = vmatpush.bf16.msra.mxu0 %v2099
    %2372 = vmatpush.bf16.msra.mxu0 %v2091
    %2373 = vmatpush.bf16.msra.mxu0 %v2083
    %2374 = vmatpush.bf16.msra.mxu0 %v2075
    %2375 = vmatpush.bf16.msra.mxu0 %v2067
    %2376 = vmatpush.bf16.msra.mxu0 %v2059
    %2377 = vmatmul.bf16.gmra.mxu0 %v1525
    %v2378 = vpop.f32.mrf.mxu0
    %v2379 = vadd.f32 %v1659, %v2378
    %v2380 = vpop.f32.mrf.mxu0
    %v2381 = vadd.f32 %v1659, %v2380
    %2382 = vdwg.mxu0
    %2383 = vmatpush.bf16.msra.mxu0 %v2179
    %2384 = vmatpush.bf16.msra.mxu0 %v2171
    %2385 = vmatpush.bf16.msra.mxu0 %v2163
    %2386 = vmatpush.bf16.msra.mxu0 %v2155
    %2387 = vmatpush.bf16.msra.mxu0 %v2147
    %2388 = vmatpush.bf16.msra.mxu0 %v2139
    %2389 = vmatpush.bf16.msra.mxu0 %v2131
    %2390 = vmatpush.bf16.msra.mxu0 %v2123
    %2391 = vmatmul.bf16.gmra.mxu0 %v1526
    %v2392 = vpop.f32.mrf.mxu0
    %v2393 = vadd.f32 %v2379, %v2392
    %v2394 = vpop.f32.mrf.mxu0
    %v2395 = vadd.f32 %v2381, %v2394
    %2396 = vdwg.mxu0
    %2397 = vmatpush.bf16.msra.mxu0 %v2116
    %2398 = vmatpush.bf16.msra.mxu0 %v2108
    %2399 = vmatpush.bf16.msra.mxu0 %v2100
    %2400 = vmatpush.bf16.msra.mxu0 %v2092
    %2401 = vmatpush.bf16.msra.mxu0 %v2084
    %2402 = vmatpush.bf16.msra.mxu0 %v2076
    %2403 = vmatpush.bf16.msra.mxu0 %v2068
    %2404 = vmatpush.bf16.msra.mxu0 %v2060
    %2405 = vmatmul.bf16.gmra.mxu0 %v1525
    %v2406 = vpop.f32.mrf.mxu0
    %v2407 = vadd.f32 %v1660, %v2406
    %v2408 = vpop.f32.mrf.mxu0
    %v2409 = vadd.f32 %v1660, %v2408
    %2410 = vdwg.mxu0
    %2411 = vmatpush.bf16.msra.mxu0 %v2180
    %2412 = vmatpush.bf16.msra.mxu0 %v2172
    %2413 = vmatpush.bf16.msra.mxu0 %v2164
    %2414 = vmatpush.bf16.msra.mxu0 %v2156
    %2415 = vmatpush.bf16.msra.mxu0 %v2148
    %2416 = vmatpush.bf16.msra.mxu0 %v2140
    %2417 = vmatpush.bf16.msra.mxu0 %v2132
    %2418 = vmatpush.bf16.msra.mxu0 %v2124
    %2419 = vmatmul.bf16.gmra.mxu0 %v1526
    %v2420 = vpop.f32.mrf.mxu0
    %v2421 = vadd.f32 %v2407, %v2420
    %v2422 = vpop.f32.mrf.mxu0
    %v2423 = vadd.f32 %v2409, %v2422
    %2424 = vdwg.mxu0
    %2425 = vmatpush.bf16.msra.mxu0 %v2117
    %2426 = vmatpush.bf16.msra.mxu0 %v2109
    %2427 = vmatpush.bf16.msra.mxu0 %v2101
    %2428 = vmatpush.bf16.msra.mxu0 %v2093
    %2429 = vmatpush.bf16.msra.mxu0 %v2085
    %2430 = vmatpush.bf16.msra.mxu0 %v2077
    %2431 = vmatpush.bf16.msra.mxu0 %v2069
    %2432 = vmatpush.bf16.msra.mxu0 %v2061
    %2433 = vmatmul.bf16.gmra.mxu0 %v1525
    %v2434 = vpop.f32.mrf.mxu0
    %v2435 = vadd.f32 %v1661, %v2434
    %v2436 = vpop.f32.mrf.mxu0
    %v2437 = vadd.f32 %v1661, %v2436
    %2438 = vdwg.mxu0
    %2439 = vmatpush.bf16.msra.mxu0 %v2181
    %2440 = vmatpush.bf16.msra.mxu0 %v2173
    %2441 = vmatpush.bf16.msra.mxu0 %v2165
    %2442 = vmatpush.bf16.msra.mxu0 %v2157
    %2443 = vmatpush.bf16.msra.mxu0 %v2149
    %2444 = vmatpush.bf16.msra.mxu0 %v2141
    %2445 = vmatpush.bf16.msra.mxu0 %v2133
    %2446 = vmatpush.bf16.msra.mxu0 %v2125
    %2447 = vmatmul.bf16.gmra.mxu0 %v1526
    %v2448 = vpop.f32.mrf.mxu0
    %v2449 = vadd.f32 %v2435, %v2448
    %v2450 = vpop.f32.mrf.mxu0
    %v2451 = vadd.f32 %v2437, %v2450
    %2452 = vdwg.mxu0
    %2453 = vmatpush.bf16.msra.mxu0 %v2118
    %2454 = vmatpush.bf16.msra.mxu0 %v2110
    %2455 = vmatpush.bf16.msra.mxu0 %v2102
    %2456 = vmatpush.bf16.msra.mxu0 %v2094
    %2457 = vmatpush.bf16.msra.mxu0 %v2086
    %2458 = vmatpush.bf16.msra.mxu0 %v2078
    %2459 = vmatpush.bf16.msra.mxu0 %v2070
    %2460 = vmatpush.bf16.msra.mxu0 %v2062
    %2461 = vmatmul.bf16.gmra.mxu0 %v1525
    %v2462 = vpop.f32.mrf.mxu0
    %v2463 = vadd.f32 %v1662, %v2462
    %v2464 = vpop.f32.mrf.mxu0
    %v2465 = vadd.f32 %v1662, %v2464
    %2466 = vdwg.mxu0
    %2467 = vmatpush.bf16.msra.mxu0 %v2182
    %2468 = vmatpush.bf16.msra.mxu0 %v2174
    %2469 = vmatpush.bf16.msra.mxu0 %v2166
    %2470 = vmatpush.bf16.msra.mxu0 %v2158
    %2471 = vmatpush.bf16.msra.mxu0 %v2150
    %2472 = vmatpush.bf16.msra.mxu0 %v2142
    %2473 = vmatpush.bf16.msra.mxu0 %v2134
    %2474 = vmatpush.bf16.msra.mxu0 %v2126
    %2475 = vmatmul.bf16.gmra.mxu0 %v1526
    %v2476 = vpop.f32.mrf.mxu0
    %v2477 = vadd.f32 %v2463, %v2476
    %v2478 = vpop.f32.mrf.mxu0
    %v2479 = vadd.f32 %v2465, %v2478
    %2480 = vdwg.mxu0
    %2481 = vmatpush.bf16.msra.mxu0 %v2119
    %2482 = vmatpush.bf16.msra.mxu0 %v2111
    %2483 = vmatpush.bf16.msra.mxu0 %v2103
    %2484 = vmatpush.bf16.msra.mxu0 %v2095
    %2485 = vmatpush.bf16.msra.mxu0 %v2087
    %2486 = vmatpush.bf16.msra.mxu0 %v2079
    %2487 = vmatpush.bf16.msra.mxu0 %v2071
    %2488 = vmatpush.bf16.msra.mxu0 %v2063
    %2489 = vmatmul.bf16.gmra.mxu0 %v1525
    %v2490 = vpop.f32.mrf.mxu0
    %v2491 = vadd.f32 %v1663, %v2490
    %v2492 = vpop.f32.mrf.mxu0
    %v2493 = vadd.f32 %v1663, %v2492
    %2494 = vdwg.mxu0
    %2495 = vmatpush.bf16.msra.mxu0 %v2183
    %2496 = vmatpush.bf16.msra.mxu0 %v2175
    %2497 = vmatpush.bf16.msra.mxu0 %v2167
    %2498 = vmatpush.bf16.msra.mxu0 %v2159
    %2499 = vmatpush.bf16.msra.mxu0 %v2151
    %2500 = vmatpush.bf16.msra.mxu0 %v2143
    %2501 = vmatpush.bf16.msra.mxu0 %v2135
    %2502 = vmatpush.bf16.msra.mxu0 %v2127
    %2503 = vmatmul.bf16.gmra.mxu0 %v1526
    %v2504 = vpop.f32.mrf.mxu0
    %v2505 = vadd.f32 %v2491, %v2504
    %v2506 = vpop.f32.mrf.mxu0
    %v2507 = vadd.f32 %v2493, %v2506
    %2508 = vdwg.mxu0
    %2509 = vmatpush.bf16.msra.mxu0 %v2120
    %2510 = vmatpush.bf16.msra.mxu0 %v2112
    %2511 = vmatpush.bf16.msra.mxu0 %v2104
    %2512 = vmatpush.bf16.msra.mxu0 %v2096
    %2513 = vmatpush.bf16.msra.mxu0 %v2088
    %2514 = vmatpush.bf16.msra.mxu0 %v2080
    %2515 = vmatpush.bf16.msra.mxu0 %v2072
    %2516 = vmatpush.bf16.msra.mxu0 %v2064
    %2517 = vmatmul.bf16.gmra.mxu0 %v1525
    %v2518 = vpop.f32.mrf.mxu0
    %v2519 = vadd.f32 %v1664, %v2518
    %v2520 = vpop.f32.mrf.mxu0
    %v2521 = vadd.f32 %v1664, %v2520
    %2522 = vdwg.mxu0
    %2523 = vmatpush.bf16.msra.mxu0 %v2184
    %2524 = vmatpush.bf16.msra.mxu0 %v2176
    %2525 = vmatpush.bf16.msra.mxu0 %v2168
    %2526 = vmatpush.bf16.msra.mxu0 %v2160
    %2527 = vmatpush.bf16.msra.mxu0 %v2152
    %2528 = vmatpush.bf16.msra.mxu0 %v2144
    %2529 = vmatpush.bf16.msra.mxu0 %v2136
    %2530 = vmatpush.bf16.msra.mxu0 %v2128
    %2531 = vmatmul.bf16.gmra.mxu0 %v1526
    %v2532 = vpop.f32.mrf.mxu0
    %v2533 = vadd.f32 %v2519, %v2532
    %v2534 = vpop.f32.mrf.mxu0
    %v2535 = vadd.f32 %v2521, %v2534
    %2536 = vdwg.mxu0
    %v2537 = vxor.u32 %v2337, 2147483648
    %v2538 = vxor.u32 %v2365, 2147483648
    %v2539 = vxor.u32 %v2393, 2147483648
    %v2540 = vxor.u32 %v2421, 2147483648
    %v2541 = vxor.u32 %v2449, 2147483648
    %v2542 = vxor.u32 %v2477, 2147483648
    %v2543 = vxor.u32 %v2505, 2147483648
    %v2544 = vxor.u32 %v2533, 2147483648
    %v2545 = vxor.u32 %v2339, 2147483648
    %v2546 = vxor.u32 %v2367, 2147483648
    %v2547 = vxor.u32 %v2395, 2147483648
    %v2548 = vxor.u32 %v2423, 2147483648
    %v2549 = vxor.u32 %v2451, 2147483648
    %v2550 = vxor.u32 %v2479, 2147483648
    %v2551 = vxor.u32 %v2507, 2147483648
    %v2552 = vxor.u32 %v2535, 2147483648
    %v2553 = vmul.f32 %v2537, 1.442695
    %v2554 = vpow.pop %v2553
    %v2555 = vmul.f32 %v2538, 1.442695
    %v2556 = vpow.pop %v2555
    %v2557 = vmul.f32 %v2539, 1.442695
    %v2558 = vpow.pop %v2557
    %v2559 = vmul.f32 %v2540, 1.442695
    %v2560 = vpow.pop %v2559
    %v2561 = vmul.f32 %v2541, 1.442695
    %v2562 = vpow.pop %v2561
    %v2563 = vmul.f32 %v2542, 1.442695
    %v2564 = vpow.pop %v2563
    %v2565 = vmul.f32 %v2543, 1.442695
    %v2566 = vpow.pop %v2565
    %v2567 = vmul.f32 %v2544, 1.442695
    %v2568 = vpow.pop %v2567
    %v2569 = vmul.f32 %v2545, 1.442695
    %v2570 = vpow.pop %v2569
    %v2571 = vmul.f32 %v2546, 1.442695
    %v2572 = vpow.pop %v2571
    %v2573 = vmul.f32 %v2547, 1.442695
    %v2574 = vpow.pop %v2573
    %v2575 = vmul.f32 %v2548, 1.442695
    %v2576 = vpow.pop %v2575
    %v2577 = vmul.f32 %v2549, 1.442695
    %v2578 = vpow.pop %v2577
    %v2579 = vmul.f32 %v2550, 1.442695
    %v2580 = vpow.pop %v2579
    %v2581 = vmul.f32 %v2551, 1.442695
    %v2582 = vpow.pop %v2581
    %v2583 = vmul.f32 %v2552, 1.442695
    %v2584 = vpow.pop %v2583
    %v2585 = vadd.f32 %v2554, 1.0
    %v2586 = vadd.f32 %v2556, 1.0
    %v2587 = vadd.f32 %v2558, 1.0
    %v2588 = vadd.f32 %v2560, 1.0
    %v2589 = vadd.f32 %v2562, 1.0
    %v2590 = vadd.f32 %v2564, 1.0
    %v2591 = vadd.f32 %v2566, 1.0
    %v2592 = vadd.f32 %v2568, 1.0
    %v2593 = vadd.f32 %v2570, 1.0
    %v2594 = vadd.f32 %v2572, 1.0
    %v2595 = vadd.f32 %v2574, 1.0
    %v2596 = vadd.f32 %v2576, 1.0
    %v2597 = vadd.f32 %v2578, 1.0
    %v2598 = vadd.f32 %v2580, 1.0
    %v2599 = vadd.f32 %v2582, 1.0
    %v2600 = vadd.f32 %v2584, 1.0
    %v2601 = vrcp.pop %v2585
    %v2602 = vmul.f32 %v2585, %v2601
    %v2603 = vsub.f32 1.0, %v2602
    %v2604 = vmul.f32 %v2601, %v2603
    %v2605 = vadd.f32 %v2601, %v2604
    %vm2606 = vweird.f32 %v2585
    %vm2607 = vweird.f32 %v2601
    %vm2608 = vmor %vm2606, %vm2607
    %v2609 = vsel %vm2608, %v2601, %v2605
    %v2610 = vand.u32 2147483647, %v2585
    %vm2611 = vcmp.eq.f32.partialorder %v2610, 8.507059e+37
    %v2612 = vand.u32 %v2585, 2147483648
    %v2613 = vor.u32 1.1754944e-38, %v2612
    %v2614 = vsel %vm2611, %v2613, %v2609
    %v2615 = vmul.f32 1.0, %v2614
    %v2616 = vrcp.pop %v2586
    %v2617 = vmul.f32 %v2586, %v2616
    %v2618 = vsub.f32 1.0, %v2617
    %v2619 = vmul.f32 %v2616, %v2618
    %v2620 = vadd.f32 %v2616, %v2619
    %vm2621 = vweird.f32 %v2586
    %vm2622 = vweird.f32 %v2616
    %vm2623 = vmor %vm2621, %vm2622
    %v2624 = vsel %vm2623, %v2616, %v2620
    %v2625 = vand.u32 2147483647, %v2586
    %vm2626 = vcmp.eq.f32.partialorder %v2625, 8.507059e+37
    %v2627 = vand.u32 %v2586, 2147483648
    %v2628 = vor.u32 1.1754944e-38, %v2627
    %v2629 = vsel %vm2626, %v2628, %v2624
    %v2630 = vmul.f32 1.0, %v2629
    %v2631 = vrcp.pop %v2587
    %v2632 = vmul.f32 %v2587, %v2631
    %v2633 = vsub.f32 1.0, %v2632
    %v2634 = vmul.f32 %v2631, %v2633
    %v2635 = vadd.f32 %v2631, %v2634
    %vm2636 = vweird.f32 %v2587
    %vm2637 = vweird.f32 %v2631
    %vm2638 = vmor %vm2636, %vm2637
    %v2639 = vsel %vm2638, %v2631, %v2635
    %v2640 = vand.u32 2147483647, %v2587
    %vm2641 = vcmp.eq.f32.partialorder %v2640, 8.507059e+37
    %v2642 = vand.u32 %v2587, 2147483648
    %v2643 = vor.u32 1.1754944e-38, %v2642
    %v2644 = vsel %vm2641, %v2643, %v2639
    %v2645 = vmul.f32 1.0, %v2644
    %v2646 = vrcp.pop %v2588
    %v2647 = vmul.f32 %v2588, %v2646
    %v2648 = vsub.f32 1.0, %v2647
    %v2649 = vmul.f32 %v2646, %v2648
    %v2650 = vadd.f32 %v2646, %v2649
    %vm2651 = vweird.f32 %v2588
    %vm2652 = vweird.f32 %v2646
    %vm2653 = vmor %vm2651, %vm2652
    %v2654 = vsel %vm2653, %v2646, %v2650
    %v2655 = vand.u32 2147483647, %v2588
    %vm2656 = vcmp.eq.f32.partialorder %v2655, 8.507059e+37
    %v2657 = vand.u32 %v2588, 2147483648
    %v2658 = vor.u32 1.1754944e-38, %v2657
    %v2659 = vsel %vm2656, %v2658, %v2654
    %v2660 = vmul.f32 1.0, %v2659
    %v2661 = vrcp.pop %v2589
    %v2662 = vmul.f32 %v2589, %v2661
    %v2663 = vsub.f32 1.0, %v2662
    %v2664 = vmul.f32 %v2661, %v2663
    %v2665 = vadd.f32 %v2661, %v2664
    %vm2666 = vweird.f32 %v2589
    %vm2667 = vweird.f32 %v2661
    %vm2668 = vmor %vm2666, %vm2667
    %v2669 = vsel %vm2668, %v2661, %v2665
    %v2670 = vand.u32 2147483647, %v2589
    %vm2671 = vcmp.eq.f32.partialorder %v2670, 8.507059e+37
    %v2672 = vand.u32 %v2589, 2147483648
    %v2673 = vor.u32 1.1754944e-38, %v2672
    %v2674 = vsel %vm2671, %v2673, %v2669
    %v2675 = vmul.f32 1.0, %v2674
    %v2676 = vrcp.pop %v2590
    %v2677 = vmul.f32 %v2590, %v2676
    %v2678 = vsub.f32 1.0, %v2677
    %v2679 = vmul.f32 %v2676, %v2678
    %v2680 = vadd.f32 %v2676, %v2679
    %vm2681 = vweird.f32 %v2590
    %vm2682 = vweird.f32 %v2676
    %vm2683 = vmor %vm2681, %vm2682
    %v2684 = vsel %vm2683, %v2676, %v2680
    %v2685 = vand.u32 2147483647, %v2590
    %vm2686 = vcmp.eq.f32.partialorder %v2685, 8.507059e+37
    %v2687 = vand.u32 %v2590, 2147483648
    %v2688 = vor.u32 1.1754944e-38, %v2687
    %v2689 = vsel %vm2686, %v2688, %v2684
    %v2690 = vmul.f32 1.0, %v2689
    %v2691 = vrcp.pop %v2591
    %v2692 = vmul.f32 %v2591, %v2691
    %v2693 = vsub.f32 1.0, %v2692
    %v2694 = vmul.f32 %v2691, %v2693
    %v2695 = vadd.f32 %v2691, %v2694
    %vm2696 = vweird.f32 %v2591
    %vm2697 = vweird.f32 %v2691
    %vm2698 = vmor %vm2696, %vm2697
    %v2699 = vsel %vm2698, %v2691, %v2695
    %v2700 = vand.u32 2147483647, %v2591
    %vm2701 = vcmp.eq.f32.partialorder %v2700, 8.507059e+37
    %v2702 = vand.u32 %v2591, 2147483648
    %v2703 = vor.u32 1.1754944e-38, %v2702
    %v2704 = vsel %vm2701, %v2703, %v2699
    %v2705 = vmul.f32 1.0, %v2704
    %v2706 = vrcp.pop %v2592
    %v2707 = vmul.f32 %v2592, %v2706
    %v2708 = vsub.f32 1.0, %v2707
    %v2709 = vmul.f32 %v2706, %v2708
    %v2710 = vadd.f32 %v2706, %v2709
    %vm2711 = vweird.f32 %v2592
    %vm2712 = vweird.f32 %v2706
    %vm2713 = vmor %vm2711, %vm2712
    %v2714 = vsel %vm2713, %v2706, %v2710
    %v2715 = vand.u32 2147483647, %v2592
    %vm2716 = vcmp.eq.f32.partialorder %v2715, 8.507059e+37
    %v2717 = vand.u32 %v2592, 2147483648
    %v2718 = vor.u32 1.1754944e-38, %v2717
    %v2719 = vsel %vm2716, %v2718, %v2714
    %v2720 = vmul.f32 1.0, %v2719
    %v2721 = vrcp.pop %v2593
    %v2722 = vmul.f32 %v2593, %v2721
    %v2723 = vsub.f32 1.0, %v2722
    %v2724 = vmul.f32 %v2721, %v2723
    %v2725 = vadd.f32 %v2721, %v2724
    %vm2726 = vweird.f32 %v2593
    %vm2727 = vweird.f32 %v2721
    %vm2728 = vmor %vm2726, %vm2727
    %v2729 = vsel %vm2728, %v2721, %v2725
    %v2730 = vand.u32 2147483647, %v2593
    %vm2731 = vcmp.eq.f32.partialorder %v2730, 8.507059e+37
    %v2732 = vand.u32 %v2593, 2147483648
    %v2733 = vor.u32 1.1754944e-38, %v2732
    %v2734 = vsel %vm2731, %v2733, %v2729
    %v2735 = vmul.f32 1.0, %v2734
    %v2736 = vrcp.pop %v2594
    %v2737 = vmul.f32 %v2594, %v2736
    %v2738 = vsub.f32 1.0, %v2737
    %v2739 = vmul.f32 %v2736, %v2738
    %v2740 = vadd.f32 %v2736, %v2739
    %vm2741 = vweird.f32 %v2594
    %vm2742 = vweird.f32 %v2736
    %vm2743 = vmor %vm2741, %vm2742
    %v2744 = vsel %vm2743, %v2736, %v2740
    %v2745 = vand.u32 2147483647, %v2594
    %vm2746 = vcmp.eq.f32.partialorder %v2745, 8.507059e+37
    %v2747 = vand.u32 %v2594, 2147483648
    %v2748 = vor.u32 1.1754944e-38, %v2747
    %v2749 = vsel %vm2746, %v2748, %v2744
    %v2750 = vmul.f32 1.0, %v2749
    %v2751 = vrcp.pop %v2595
    %v2752 = vmul.f32 %v2595, %v2751
    %v2753 = vsub.f32 1.0, %v2752
    %v2754 = vmul.f32 %v2751, %v2753
    %v2755 = vadd.f32 %v2751, %v2754
    %vm2756 = vweird.f32 %v2595
    %vm2757 = vweird.f32 %v2751
    %vm2758 = vmor %vm2756, %vm2757
    %v2759 = vsel %vm2758, %v2751, %v2755
    %v2760 = vand.u32 2147483647, %v2595
    %vm2761 = vcmp.eq.f32.partialorder %v2760, 8.507059e+37
    %v2762 = vand.u32 %v2595, 2147483648
    %v2763 = vor.u32 1.1754944e-38, %v2762
    %v2764 = vsel %vm2761, %v2763, %v2759
    %v2765 = vmul.f32 1.0, %v2764
    %v2766 = vrcp.pop %v2596
    %v2767 = vmul.f32 %v2596, %v2766
    %v2768 = vsub.f32 1.0, %v2767
    %v2769 = vmul.f32 %v2766, %v2768
    %v2770 = vadd.f32 %v2766, %v2769
    %vm2771 = vweird.f32 %v2596
    %vm2772 = vweird.f32 %v2766
    %vm2773 = vmor %vm2771, %vm2772
    %v2774 = vsel %vm2773, %v2766, %v2770
    %v2775 = vand.u32 2147483647, %v2596
    %vm2776 = vcmp.eq.f32.partialorder %v2775, 8.507059e+37
    %v2777 = vand.u32 %v2596, 2147483648
    %v2778 = vor.u32 1.1754944e-38, %v2777
    %v2779 = vsel %vm2776, %v2778, %v2774
    %v2780 = vmul.f32 1.0, %v2779
    %v2781 = vrcp.pop %v2597
    %v2782 = vmul.f32 %v2597, %v2781
    %v2783 = vsub.f32 1.0, %v2782
    %v2784 = vmul.f32 %v2781, %v2783
    %v2785 = vadd.f32 %v2781, %v2784
    %vm2786 = vweird.f32 %v2597
    %vm2787 = vweird.f32 %v2781
    %vm2788 = vmor %vm2786, %vm2787
    %v2789 = vsel %vm2788, %v2781, %v2785
    %v2790 = vand.u32 2147483647, %v2597
    %vm2791 = vcmp.eq.f32.partialorder %v2790, 8.507059e+37
    %v2792 = vand.u32 %v2597, 2147483648
    %v2793 = vor.u32 1.1754944e-38, %v2792
    %v2794 = vsel %vm2791, %v2793, %v2789
    %v2795 = vmul.f32 1.0, %v2794
    %v2796 = vrcp.pop %v2598
    %v2797 = vmul.f32 %v2598, %v2796
    %v2798 = vsub.f32 1.0, %v2797
    %v2799 = vmul.f32 %v2796, %v2798
    %v2800 = vadd.f32 %v2796, %v2799
    %vm2801 = vweird.f32 %v2598
    %vm2802 = vweird.f32 %v2796
    %vm2803 = vmor %vm2801, %vm2802
    %v2804 = vsel %vm2803, %v2796, %v2800
    %v2805 = vand.u32 2147483647, %v2598
    %vm2806 = vcmp.eq.f32.partialorder %v2805, 8.507059e+37
    %v2807 = vand.u32 %v2598, 2147483648
    %v2808 = vor.u32 1.1754944e-38, %v2807
    %v2809 = vsel %vm2806, %v2808, %v2804
    %v2810 = vmul.f32 1.0, %v2809
    %v2811 = vrcp.pop %v2599
    %v2812 = vmul.f32 %v2599, %v2811
    %v2813 = vsub.f32 1.0, %v2812
    %v2814 = vmul.f32 %v2811, %v2813
    %v2815 = vadd.f32 %v2811, %v2814
    %vm2816 = vweird.f32 %v2599
    %vm2817 = vweird.f32 %v2811
    %vm2818 = vmor %vm2816, %vm2817
    %v2819 = vsel %vm2818, %v2811, %v2815
    %v2820 = vand.u32 2147483647, %v2599
    %vm2821 = vcmp.eq.f32.partialorder %v2820, 8.507059e+37
    %v2822 = vand.u32 %v2599, 2147483648
    %v2823 = vor.u32 1.1754944e-38, %v2822
    %v2824 = vsel %vm2821, %v2823, %v2819
    %v2825 = vmul.f32 1.0, %v2824
    %v2826 = vrcp.pop %v2600
    %v2827 = vmul.f32 %v2600, %v2826
    %v2828 = vsub.f32 1.0, %v2827
    %v2829 = vmul.f32 %v2826, %v2828
    %v2830 = vadd.f32 %v2826, %v2829
    %vm2831 = vweird.f32 %v2600
    %vm2832 = vweird.f32 %v2826
    %vm2833 = vmor %vm2831, %vm2832
    %v2834 = vsel %vm2833, %v2826, %v2830
    %v2835 = vand.u32 2147483647, %v2600
    %vm2836 = vcmp.eq.f32.partialorder %v2835, 8.507059e+37
    %v2837 = vand.u32 %v2600, 2147483648
    %v2838 = vor.u32 1.1754944e-38, %v2837
    %v2839 = vsel %vm2836, %v2838, %v2834
    %v2840 = vmul.f32 1.0, %v2839
    %v2841 = vpack.c.bf16 %v2630, %v2615
    %v2842 = vpack.c.bf16 %v2660, %v2645
    %v2843 = vpack.c.bf16 %v2690, %v2675
    %v2844 = vpack.c.bf16 %v2720, %v2705
    %v2845 = vpack.c.bf16 %v2750, %v2735
    %v2846 = vpack.c.bf16 %v2780, %v2765
    %v2847 = vpack.c.bf16 %v2810, %v2795
    %v2848 = vpack.c.bf16 %v2840, %v2825
    %2849 = vst [vmem:[%s10] sm:$0xff] %v2841
    %2850 = vst [vmem:[%s10 + $0x8] sm:$0xff] %v2842
    %2851 = vst [vmem:[%s10 + $0x10] sm:$0xff] %v2843
    %2852 = vst [vmem:[%s10 + $0x18] sm:$0xff] %v2844
    %2853 = vst [vmem:[%s10 + $0x20] sm:$0xff] %v2845
    %2854 = vst [vmem:[%s10 + $0x28] sm:$0xff] %v2846
    %2855 = vst [vmem:[%s10 + $0x30] sm:$0xff] %v2847
    %2856 = vst [vmem:[%s10 + $0x38] sm:$0xff] %v2848
    %2857 = vst [vmem:[#allocation7] sm:$0xff] %v1346
    %2858 = vst [vmem:[#allocation7 + $0x8] sm:$0xff] %v1348
    %2859 = vst [vmem:[#allocation8] sm:$0xff] %v1374
    %2860 = vst [vmem:[#allocation8 + $0x8] sm:$0xff] %v1376
    // Predicated region
    $region50: #{vae_forward.1} parent=1 // pred_check
      _
    $region51: #{vae_forward.1} parent=1 // pred_check_branch
      %2862 = sbr.rel (0) target = $region53
    $region52: #{vae_forward.1} parent=1 // pred_region
      _
    $region53: #{vae_forward.1} parent=1 // pred_fallthru
      _
    // Predicated region
    $region54: #{vae_forward.1} parent=1 // pred_check
      _
    $region55: #{vae_forward.1} parent=1 // pred_check_branch
      %2864 = sbr.rel (0) target = $region57
    $region56: #{vae_forward.1} parent=1 // pred_region
      %2866 = vsyncadd [#allocation4], 0
      %s2867 = sshll.u32 [#allocation7], 4
      %s2868 = int_to_ptr.vmem [resolvable:$true] %s2867
      %s2869 = sshll.u32 %s11, 4
      %s2870 = int_to_ptr.hbm [resolvable:$true] %s2869
      %2875 = dma.vmem_to_hbm [thread:$0]  %s2868, 256, %s2870, [#allocation4], 128, 128, 8
    $region57: #{vae_forward.1} parent=1 // pred_fallthru
      _
    // Predicated region
    $region58: #{vae_forward.1} parent=1 // pred_check
      _
    $region59: #{vae_forward.1} parent=1 // pred_check_branch
      %2877 = sbr.rel (0) target = $region61
    $region60: #{vae_forward.1} parent=1 // pred_region
      %2879 = vsyncadd [#allocation9], 0
      %s2880 = sshll.u32 [#allocation8], 4
      %s2881 = int_to_ptr.vmem [resolvable:$true] %s2880
      %s2882 = sshll.u32 %s12, 4
      %s2883 = int_to_ptr.hbm [resolvable:$true] %s2882
      %2888 = dma.vmem_to_hbm [thread:$0]  %s2881, 256, %s2883, [#allocation9], 128, 128, 8
    $region61: #{vae_forward.1} parent=1 // pred_fallthru
      _
    // Predicated region
    $region62: #{vae_forward.1} parent=1 // pred_check
      _
    $region63: #{vae_forward.1} parent=1 // pred_check_branch
      %2890 = sbr.rel (0) target = $region65
    $region64: #{vae_forward.1} parent=1 // pred_region
      _
    $region65: #{vae_forward.1} parent=1 // pred_fallthru
      _
    // Predicated region
    $region66: #{vae_forward.1} parent=1 // pred_check
      _
    $region67: #{vae_forward.1} parent=1 // pred_check_branch
      %2892 = sbr.rel (0) target = $region69
    $region68: #{vae_forward.1} parent=1 // pred_region
      %2894 = dma.done [#allocation4], 256
    $region69: #{vae_forward.1} parent=1 // pred_fallthru
      _
    // Predicated region
    $region70: #{vae_forward.1} parent=1 // pred_check
      _
    $region71: #{vae_forward.1} parent=1 // pred_check_branch
      %2896 = sbr.rel (0) target = $region73
    $region72: #{vae_forward.1} parent=1 // pred_region
      %2898 = dma.done [#allocation9], 256
    $region73: #{vae_forward.1} parent=1 // pred_fallthru
      _
    %2899 = vsyncpa [#allocation3], 1
    %2900 = vsyncpa [#allocation6], 1
    %2901 = vsyncpa [#allocation4], 1
    %2902 = vsyncpa [#allocation9], 1

</llo_original>
